<compile_context>
chip_gen: v5e
topology: v5e:2x2
jax: 0.10.0
libtpu: 0.0.40
codegen_flags: <defaults>
</compile_context>

<pallas_src>
import math

import jax
import jax.numpy as jnp
from jax import lax
from jax.experimental import pallas as pl
from jax.experimental.pallas import tpu as pltpu  # noqa: F401  (CompilerParams for the production tiling plan)

# ------------------------- config (small, module-consistent) -------------------------
B = 2              # batch
N_Q = 16           # number of query points
NUM_LATENTS = 8    # latent sequence length
WIDTH = 32         # transformer width
HEADS = 4
HEAD_DIM = WIDTH // HEADS
OUT_CHANNELS = 4
NUM_FREQS = 8      # FourierEmbedder(num_freqs=8, include_input=True, include_pi=True)
INPUT_DIM = 3
FOURIER_DIM = INPUT_DIM * (2 * NUM_FREQS + 1)   # 51
F_PAD = 64                                      # fourier dim zero-padded for alignment
Q_PAD = 8                                       # raw query coords zero-padded 3 -> 8
LN_EPS = 1e-5
OUT_PAD = 128                                   # lane-dense output slab width

BN = B * N_Q            # 32 query rows (all batches folded)
BM = B * NUM_LATENTS    # 16 latent rows

# ---- packed-weight layout (static offsets; all sublane/lane aligned) ----------------
# Row-packed slab WR (rows, WIDTH), bf16: weights used as x @ W with output width = WIDTH.
WQ_OFF = 0
WCQ_OFF = WQ_OFF + F_PAD          # 64   (attention scale folded in)
WCP_OFF = WCQ_OFF + WIDTH         # 96
WMP_OFF = WCP_OFF + WIDTH         # 128
WR_ROWS = WMP_OFF + 4 * WIDTH     # 256
# Col-packed slab WC (WIDTH, cols), bf16: weights used as x @ W with input width = WIDTH;
# every segment starts on a 128-lane tile boundary (wout kept 128 wide -> lane-dense out).
WFC_OFF = 0
WCKV_OFF = 128                    # (K columns pre-scaled)
WOUT_OFF = 256
WC_COLS = 384
# Bias / LayerNorm / Fourier table (f32): one parameter per 8-row-aligned slot,
# zero-padded to 128 lanes; the (8, F_PAD) fourier phase table lives in the last rows.
(V_BQ, V_LN1G, V_LN1B, V_LN2G, V_LN2B, V_BCQ, V_BCKV, V_BCP,
 V_LN3G, V_LN3B, V_BFC, V_BMP, V_LNPG, V_LNPB, V_BOUT) = range(15)
VEC_SLOT = 8
FTAB_ROW = 15 * VEC_SLOT          # 120
VEC_ROWS = FTAB_ROW + Q_PAD       # 128
VEC_COLS = 128

_NEG_INF = -1e30

# ---------------- exact-GELU helpers (erf: XLA f32 rational approximation) -----------
_ERF_ALPHA = (-2.72614225801306e-10, 2.77068142495902e-08, -2.10102402082508e-06,
              -5.69250639462346e-05, -7.34990630326855e-04, -2.95459980854025e-03,
              -1.60960333262415e-02)
_ERF_BETA = (-1.45660718464996e-05, -2.13374055278905e-04, -1.68282697438203e-03,
             -7.37332916720468e-03, -1.42647390514189e-02)


def _poly(x, coeffs):
    p = jnp.full_like(x, coeffs[0])
    for c in coeffs[1:]:
        p = p * x + c
    return p


def _erf(x):
    xc = jnp.clip(x, -4.0, 4.0)
    x2 = xc * xc
    # divide -> EUP reciprocal (denominator is bounded away from zero on [-4,4]).
    return xc * _poly(x2, _ERF_ALPHA) * pl.reciprocal(_poly(x2, _ERF_BETA), approx=True)


def _gelu_exact(x):   # nn.GELU() default (erf form)
    return 0.5 * x * (1.0 + _erf(x * (1.0 / math.sqrt(2.0))))


def _layernorm(x, g, b):   # PyTorch LayerNorm semantics (biased variance, eps=1e-5)
    mu = jnp.mean(x, axis=-1, keepdims=True)
    xc = x - mu
    var = jnp.mean(xc * xc, axis=-1, keepdims=True)
    return xc * lax.rsqrt(var + LN_EPS) * g + b


def _sincos(x):
    """sin(x), cos(x) via quadrant range-reduction + short odd/even polynomials.

    Uses only mul/add/floor/compare/select so it lowers on every TPU generation
    (no reliance on Mosaic trig support).  |error| ~1e-4 for |x| up to ~1e3.
    """
    t = x * (2.0 / math.pi)
    q = jnp.floor(t + 0.5)                       # nearest quadrant index (float, exact)
    r = (t - q) * (math.pi / 2.0)                # residual in [-pi/4, pi/4]
    r2 = r * r
    sin_r = r * (1.0 + r2 * (-1.0 / 6.0 + r2 * (1.0 / 120.0 + r2 * (-1.0 / 5040.0))))
    cos_r = 1.0 + r2 * (-0.5 + r2 * (1.0 / 24.0 + r2 * (-1.0 / 720.0 + r2 * (1.0 / 40320.0))))
    qm = q - 4.0 * jnp.floor(q * 0.25)           # quadrant mod 4, in {0,1,2,3}
    use_cos = jnp.logical_or(qm == 1.0, qm == 3.0)
    neg_sin = jnp.logical_or(qm == 2.0, qm == 3.0)
    neg_cos = jnp.logical_or(qm == 1.0, qm == 2.0)
    s_base = jnp.where(use_cos, cos_r, sin_r)
    c_base = jnp.where(use_cos, sin_r, cos_r)
    return jnp.where(neg_sin, -s_base, s_base), jnp.where(neg_cos, -c_base, c_base)


# --------------------------------- the Pallas kernel ---------------------------------
def decoder_kernel(q_ref, lat_ref, wr_ref, wc_ref, vec_ref, out_ref):
    f32 = jnp.float32
    bf16 = jnp.bfloat16

    def vec(i, n):                       # (1, n) row of the packed bias / LN table (f32)
        r = i * VEC_SLOT
        return vec_ref[r:r + 1, 0:n]

    # ---- packed weights: static, sublane/lane-aligned slices of the two bf16 slabs ----
    wq = wr_ref[WQ_OFF:WQ_OFF + F_PAD, :]                 # (64, W)  zero-padded rows
    wcq = wr_ref[WCQ_OFF:WCQ_OFF + WIDTH, :]              # (W, W)   scale folded in
    wcp = wr_ref[WCP_OFF:WCP_OFF + WIDTH, :]              # (W, W)
    wmp = wr_ref[WMP_OFF:WMP_OFF + 4 * WIDTH, :]          # (4W, W)
    wfc = wc_ref[:, WFC_OFF:WFC_OFF + 4 * WIDTH]          # (W, 4W)
    wckv = wc_ref[:, WCKV_OFF:WCKV_OFF + 2 * WIDTH]       # (W, 2W)  K cols pre-scaled
    wout = wc_ref[:, WOUT_OFF:WOUT_OFF + OUT_PAD]         # (W, 128) lane-dense out proj

    # ---- Fourier embedding, in-kernel (sin/cos overlap MXU work; f32 throughout) ----
    qraw = q_ref[...]                                             # (BN, 8) raw xyz (+0 pad)
    ftab = vec_ref[FTAB_ROW:FTAB_ROW + Q_PAD, 0:F_PAD]            # (8, 64) dim-select * freq
    phase = jnp.dot(qraw, ftab, preferred_element_type=f32)       # (BN, 64)
    sin_p, cos_p = _sincos(phase)
    col = lax.broadcasted_iota(jnp.int32, (BN, F_PAD), 1)
    qemb = jnp.where(col < INPUT_DIM, phase,
           jnp.where(col < INPUT_DIM * (NUM_FREQS + 1), sin_p,
           jnp.where(col < FOURIER_DIM, cos_p, 0.0)))             # (BN, 64) f32

    lat = lat_ref[...]                                            # (BM, W) f32

    # query_proj -- all batches at once (bf16 MXU inputs, f32 accumulate)
    q = jnp.dot(qemb.astype(bf16), wq, preferred_element_type=f32) + vec(V_BQ, WIDTH)

    # ResidualCrossAttentionBlock: x = x + attn(ln_1(x), ln_2(data))
    xq = _layernorm(q, vec(V_LN1G, WIDTH), vec(V_LN1B, WIDTH))
    xd = _layernorm(lat, vec(V_LN2G, WIDTH), vec(V_LN2B, WIDTH))
    cq = jnp.dot(xq.astype(bf16), wcq, preferred_element_type=f32) + vec(V_BCQ, WIDTH)
    kv = jnp.dot(xd.astype(bf16), wckv, preferred_element_type=f32) + vec(V_BCKV, 2 * WIDTH)
    cq16 = cq.astype(bf16)                                        # (BN, W)
    kv16 = kv.astype(bf16)                                        # (BM, 2W)

    # Block-diagonal additive mask over the folded rows: cross-batch pairs -> -inf.
    ri = lax.broadcasted_iota(jnp.int32, (BN, BM), 0)
    ci = lax.broadcasted_iota(jnp.int32, (BN, BM), 1)
    same = jnp.zeros((BN, BM), jnp.bool_)
    for b in range(B):
        in_q = jnp.logical_and(ri >= b * N_Q, ri < (b + 1) * N_Q)
        in_k = jnp.logical_and(ci >= b * NUM_LATENTS, ci < (b + 1) * NUM_LATENTS)
        same = jnp.logical_or(same, jnp.logical_and(in_q, in_k))
    neg = jnp.where(same, 0.0, _NEG_INF).astype(f32)

    # QKVMultiheadCrossAttention over folded rows; kv per head is [k | v].
    kt_dims = (((1,), (1,)), ((), ()))   # q @ k^T without an explicit transpose
    acc = jnp.zeros((BN, WIDTH), f32)
    for h in range(HEADS):
        qh = cq16[:, h * HEAD_DIM:(h + 1) * HEAD_DIM]                    # (BN, C)
        base = 2 * h * HEAD_DIM
        kh = kv16[:, base:base + HEAD_DIM]                               # (BM, C)
        vh = kv16[:, base + HEAD_DIM:base + 2 * HEAD_DIM]                # (BM, C)
        logits = lax.dot_general(qh, kh, kt_dims,
                                 preferred_element_type=f32) + neg       # (BN, BM)
        m = jnp.max(logits, axis=-1, keepdims=True)
        e = jnp.exp(logits - m)
        p = e * pl.reciprocal(jnp.sum(e, axis=-1, keepdims=True), approx=True)
        ho = jnp.dot(p.astype(bf16), vh, preferred_element_type=f32)     # (BN, C)
        # c_proj folded into the head loop (MRB-friendly accumulate; no concat).
        acc = acc + jnp.dot(ho.astype(bf16), wcp[h * HEAD_DIM:(h + 1) * HEAD_DIM, :],
                            preferred_element_type=f32)
    x = q + acc + vec(V_BCP, WIDTH)

    # x = x + mlp(ln_3(x)),  MLP = Linear(W,4W) -> GELU -> Linear(4W,W)
    h3 = _layernorm(x, vec(V_LN3G, WIDTH), vec(V_LN3B, WIDTH))
    hf = jnp.dot(h3.astype(bf16), wfc, preferred_element_type=f32) + vec(V_BFC, 4 * WIDTH)
    hf = _gelu_exact(hf)
    x = x + jnp.dot(hf.astype(bf16), wmp, preferred_element_type=f32) + vec(V_BMP, WIDTH)

    # ln_post + output_proj -> lane-dense (BN, 128) slab (cols >= OUT_CHANNELS are zero)
    xp = _layernorm(x, vec(V_LNPG, WIDTH), vec(V_LNPB, WIDTH))
    out = jnp.dot(xp.astype(bf16), wout, preferred_element_type=f32) + vec(V_BOUT, OUT_PAD)
    out_ref[...] = out.astype(out_ref.dtype)


# --------------------------- one-time parameter packing --------------------------------
def pack_params(params):
    """Pre-transpose, pre-scale and pack all weights once (never per call).

    Attention scale (HEAD_DIM**-0.25) is folded into wcq/bcq and the K-columns of
    wckv/bckv (scale hits q AND k in the reference, so scale^2 is absorbed exactly).
    Weight slabs are bf16 (MXU-native); the bias/LN/ftab table stays f32.
    """
    f32 = jnp.float32
    scale = float(HEAD_DIM ** -0.25)
    kscale = jnp.array([scale if (c % (2 * HEAD_DIM)) < HEAD_DIM else 1.0
                        for c in range(2 * WIDTH)], f32)

    wq_p = jnp.zeros((F_PAD, WIDTH), f32).at[:FOURIER_DIM, :].set(params["wq"].T)
    wr = jnp.concatenate(
        [wq_p, params["wcq"].T * scale, params["wcp"].T, params["wmp"].T],
        axis=0).astype(jnp.bfloat16)
    assert wr.shape == (WR_ROWS, WIDTH)

    def pad_cols(w_t):   # zero-pad columns to a full 128-lane segment
        return jnp.zeros((WIDTH, 128), f32).at[:, :w_t.shape[1]].set(w_t)

    wc = jnp.concatenate(
        [params["wfc"].T, pad_cols(params["wckv"].T * kscale[None, :]),
         pad_cols(params["wout"].T)], axis=1).astype(jnp.bfloat16)
    assert wc.shape == (WIDTH, WC_COLS)

    vec_entries = [
        params["bq"], params["ln1_g"], params["ln1_b"], params["ln2_g"], params["ln2_b"],
        params["bcq"] * scale, params["bckv"] * kscale, params["bcp"],
        params["ln3_g"], params["ln3_b"], params["bfc"], params["bmp"],
        params["lnp_g"], params["lnp_b"], params["bout"],
    ]
    vec_tbl = jnp.zeros((VEC_ROWS, VEC_COLS), f32)
    for i, v in enumerate(vec_entries):
        v = v.astype(f32)
        vec_tbl = vec_tbl.at[i * VEC_SLOT, :v.shape[0]].set(v)

    # Fourier phase table: phase[:, c] = queries[:, dsel[c]] * fval[c]
    # column order matches PyTorch: [xyz | sin(d0f0..d2f7) | cos(d0f0..d2f7) | pad]
    ftab = jnp.zeros((Q_PAD, F_PAD), f32)
    for d in range(INPUT_DIM):
        ftab = ftab.at[d, d].set(1.0)
        for j in range(NUM_FREQS):
            f = float((2.0 ** j) * math.pi)
            ftab = ftab.at[d, INPUT_DIM + d * NUM_FREQS + j].set(f)
            ftab = ftab.at[d, INPUT_DIM + INPUT_DIM * NUM_FREQS + d * NUM_FREQS + j].set(f)
    vec_tbl = vec_tbl.at[FTAB_ROW:FTAB_ROW + Q_PAD, :F_PAD].set(ftab)

    return jax.device_put(wr), jax.device_put(wc), jax.device_put(vec_tbl)


# ------------------------------------ forward ------------------------------------------
@jax.jit
def cross_attention_decoder(queries, latents, wr, wc, vec_tbl):
    # Only the raw xyz queries (padded 3 -> 8 lanes) cross HBM; Fourier features are
    # built inside the kernel.
    qpad = jnp.pad(queries.reshape(BN, INPUT_DIM).astype(jnp.float32),
                   ((0, 0), (0, Q_PAD - INPUT_DIM)))
    out = pl.pallas_call(
        decoder_kernel,
        out_shape=jax.ShapeDtypeStruct((BN, OUT_PAD), jnp.float32),   # lane-dense store
        # Gridless: one invocation, whole (tiny) arrays resident in VMEM.
        # TODO(synk): production N_Q -> 1-D grid over 256-512 query-row tiles,
        #   dimension_semantics=("parallel",) (2 TCs on v7x), constant index_maps for
        #   wr/wc/vec so weights stay resident, vmem_limit_bytes raised on v5e (16 MiB
        #   scoped default) and tile size re-derived for v7x's 64 MiB VMEM.
    )(qpad, latents.reshape(BM, WIDTH).astype(jnp.float32), wr, wc, vec_tbl)
    return out[:, :OUT_CHANNELS].reshape(B, N_Q, OUT_CHANNELS)


# --------------------------- pure-JAX reference (correctness) --------------------------
def _reference(queries, latents, params):
    freqs = (2.0 ** jnp.arange(NUM_FREQS, dtype=jnp.float32)) * jnp.pi
    emb = (queries[..., None] * freqs).reshape(B, N_Q, INPUT_DIM * NUM_FREQS)
    qemb = jnp.concatenate([queries, jnp.sin(emb), jnp.cos(emb)], axis=-1)

    def ln(x, g, b):
        mu = jnp.mean(x, -1, keepdims=True)
        xc = x - mu
        var = jnp.mean(xc * xc, -1, keepdims=True)
        return xc * lax.rsqrt(var + LN_EPS) * g + b

    with jax.default_matmul_precision("float32"):
        q = qemb @ params["wq"].T + params["bq"]
        xq = ln(q, params["ln1_g"], params["ln1_b"])
        xd = ln(latents, params["ln2_g"], params["ln2_b"])
        cq = (xq @ params["wcq"].T + params["bcq"]).reshape(B, N_Q, HEADS, HEAD_DIM)
        kv = (xd @ params["wckv"].T + params["bckv"]).reshape(B, NUM_LATENTS, HEADS,
                                                              2 * HEAD_DIM)
        k, v = kv[..., :HEAD_DIM], kv[..., HEAD_DIM:]
        scale = 1.0 / math.sqrt(math.sqrt(HEAD_DIM))
        w = jnp.einsum("bthc,bshc->bhts", cq * scale, k * scale)
        w = jax.nn.softmax(w, axis=-1)
        o = jnp.einsum("bhts,bshc->bthc", w, v).reshape(B, N_Q, WIDTH)
        x = q + (o @ params["wcp"].T + params["bcp"])
        h = ln(x, params["ln3_g"], params["ln3_b"]) @ params["wfc"].T + params["bfc"]
        h = jax.nn.gelu(h, approximate=False)
        x = x + (h @ params["wmp"].T + params["bmp"])
        x = ln(x, params["lnp_g"], params["lnp_b"])
        return x @ params["wout"].T + params["bout"]


# ------------------------------------- main -------------------------------------------
if __name__ == "__main__":
    key = jax.random.PRNGKey(0)
    keys = iter(jax.random.split(key, 32))

    def nrm(shape, scl=0.1):
        return scl * jax.random.normal(next(keys), shape, dtype=jnp.float32)

    # Deterministic synthetic parameters (shapes follow the module's __init__).
    params = {
        "wq": nrm((WIDTH, FOURIER_DIM)), "bq": nrm((WIDTH,)),               # query_proj
        "ln1_g": 1.0 + nrm((WIDTH,)), "ln1_b": nrm((WIDTH,)),               # attn.ln_1
        "ln2_g": 1.0 + nrm((WIDTH,)), "ln2_b": nrm((WIDTH,)),               # attn.ln_2
        "wcq": nrm((WIDTH, WIDTH)), "bcq": nrm((WIDTH,)),                   # c_q (qkv_bias)
        "wckv": nrm((2 * WIDTH, WIDTH)), "bckv": nrm((2 * WIDTH,)),         # c_kv
        "wcp": nrm((WIDTH, WIDTH)), "bcp": nrm((WIDTH,)),                   # c_proj
        "ln3_g": 1.0 + nrm((WIDTH,)), "ln3_b": nrm((WIDTH,)),               # attn.ln_3
        "wfc": nrm((4 * WIDTH, WIDTH)), "bfc": nrm((4 * WIDTH,)),           # mlp.c_fc
        "wmp": nrm((WIDTH, 4 * WIDTH)), "bmp": nrm((WIDTH,)),               # mlp.c_proj
        "lnp_g": 1.0 + nrm((WIDTH,)), "lnp_b": nrm((WIDTH,)),               # ln_post
        "wout": nrm((OUT_CHANNELS, WIDTH)), "bout": nrm((OUT_CHANNELS,)),   # output_proj
    }
    queries = jax.random.normal(next(keys), (B, N_Q, INPUT_DIM), dtype=jnp.float32)
    latents = jax.random.normal(next(keys), (B, NUM_LATENTS, WIDTH), dtype=jnp.float32)

    wr, wc, vec_tbl = pack_params(params)            # one-time packing, NOT per call
    out = cross_attention_decoder(queries, latents, wr, wc, vec_tbl)
    jax.block_until_ready(out)
    assert out.shape == (B, N_Q, OUT_CHANNELS) and out.dtype == jnp.float32

    ref = _reference(queries, latents, params)
    err = float(jnp.max(jnp.abs(out - ref)))
    # Tolerance covers bf16 MXU inputs + approx reciprocals + in-kernel sin/cos
    # (expected max |diff| ~5e-3 at these scales).
    assert err < 2.5e-2, f"kernel/reference mismatch: max |diff| = {err}"

    # TODO(synk): use_checkpoint / flash only switch the PyTorch autograd / attention
    # backend, not the math, so they are intentionally no-ops here.
    print("KERNEL_OK")
</pallas_src>

<mosaic_0001>
module attributes {stable_mosaic.version = 11 : i64} {
  func.func @decoder_kernel(%arg0: memref<32x8xf32, #tpu.memory_space<vmem>>, %arg1: memref<16x32xf32, #tpu.memory_space<vmem>>, %arg2: memref<256x32xbf16, #tpu.memory_space<vmem>>, %arg3: memref<32x384xbf16, #tpu.memory_space<vmem>>, %arg4: memref<128x128xf32, #tpu.memory_space<vmem>>, %arg5: memref<32x128xf32, #tpu.memory_space<vmem>>) attributes {dimension_semantics = [], scalar_prefetch = 0 : i64, scratch_operands = 0 : i64, tpu.core_type = #tpu.core_type<tc>} {
    %c0 = arith.constant 0 : index
    %c0_0 = arith.constant 0 : index
    %0 = vector.load %arg2[%c0, %c0_0] : memref<256x32xbf16, #tpu.memory_space<vmem>>, vector<64x32xbf16>
    %c64 = arith.constant 64 : index
    %c0_1 = arith.constant 0 : index
    %1 = vector.load %arg2[%c64, %c0_1] : memref<256x32xbf16, #tpu.memory_space<vmem>>, vector<32x32xbf16>
    %c96 = arith.constant 96 : index
    %c0_2 = arith.constant 0 : index
    %2 = vector.load %arg2[%c96, %c0_2] : memref<256x32xbf16, #tpu.memory_space<vmem>>, vector<32x32xbf16>
    %c128 = arith.constant 128 : index
    %c0_3 = arith.constant 0 : index
    %3 = vector.load %arg2[%c128, %c0_3] : memref<256x32xbf16, #tpu.memory_space<vmem>>, vector<128x32xbf16>
    %c0_4 = arith.constant 0 : index
    %c0_5 = arith.constant 0 : index
    %4 = vector.load %arg3[%c0_4, %c0_5] : memref<32x384xbf16, #tpu.memory_space<vmem>>, vector<32x128xbf16>
    %c0_6 = arith.constant 0 : index
    %c128_7 = arith.constant 128 : index
    %5 = vector.load %arg3[%c0_6, %c128_7] : memref<32x384xbf16, #tpu.memory_space<vmem>>, vector<32x64xbf16>
    %c0_8 = arith.constant 0 : index
    %c256 = arith.constant 256 : index
    %6 = vector.load %arg3[%c0_8, %c256] : memref<32x384xbf16, #tpu.memory_space<vmem>>, vector<32x128xbf16>
    %c0_9 = arith.constant 0 : index
    %c0_10 = arith.constant 0 : index
    %7 = vector.load %arg0[%c0_9, %c0_10] : memref<32x8xf32, #tpu.memory_space<vmem>>, vector<32x8xf32>
    %c120 = arith.constant 120 : index
    %c0_11 = arith.constant 0 : index
    %8 = vector.load %arg4[%c120, %c0_11] : memref<128x128xf32, #tpu.memory_space<vmem>>, vector<8x64xf32>
    %cst = arith.constant dense<0.000000e+00> : vector<32x64xf32>
    %9 = tpu.matmul %7, %8, %cst {dimension_numbers = #tpu.dot_dimension_numbers<[1], [0], [0], [1], [0, 0, 1, 1], [], []>} : vector<32x8xf32>, vector<8x64xf32>, vector<32x64xf32> -> vector<32x64xf32>
    %cst_12 = arith.constant 0.636619746 : f32
    %10 = vector.broadcast %cst_12 : f32 to vector<32x64xf32>
    %11 = arith.mulf %9, %10 : vector<32x64xf32>
    %cst_13 = arith.constant 5.000000e-01 : f32
    %12 = vector.broadcast %cst_13 : f32 to vector<32x64xf32>
    %13 = arith.addf %11, %12 : vector<32x64xf32>
    %14 = math.floor %13 : vector<32x64xf32>
    %15 = arith.subf %11, %14 : vector<32x64xf32>
    %cst_14 = arith.constant 1.57079637 : f32
    %16 = vector.broadcast %cst_14 : f32 to vector<32x64xf32>
    %17 = arith.mulf %15, %16 : vector<32x64xf32>
    %18 = arith.mulf %17, %17 : vector<32x64xf32>
    %cst_15 = arith.constant -1.98412701E-4 : f32
    %19 = vector.broadcast %cst_15 : f32 to vector<32x64xf32>
    %20 = arith.mulf %18, %19 : vector<32x64xf32>
    %cst_16 = arith.constant 0.00833333377 : f32
    %21 = vector.broadcast %cst_16 : f32 to vector<32x64xf32>
    %22 = arith.addf %21, %20 : vector<32x64xf32>
    %23 = arith.mulf %18, %22 : vector<32x64xf32>
    %cst_17 = arith.constant -0.166666672 : f32
    %24 = vector.broadcast %cst_17 : f32 to vector<32x64xf32>
    %25 = arith.addf %24, %23 : vector<32x64xf32>
    %26 = arith.mulf %18, %25 : vector<32x64xf32>
    %cst_18 = arith.constant 1.000000e+00 : f32
    %27 = vector.broadcast %cst_18 : f32 to vector<32x64xf32>
    %28 = arith.addf %27, %26 : vector<32x64xf32>
    %29 = arith.mulf %17, %28 : vector<32x64xf32>
    %cst_19 = arith.constant 2.48015876E-5 : f32
    %30 = vector.broadcast %cst_19 : f32 to vector<32x64xf32>
    %31 = arith.mulf %18, %30 : vector<32x64xf32>
    %cst_20 = arith.constant -0.00138888892 : f32
    %32 = vector.broadcast %cst_20 : f32 to vector<32x64xf32>
    %33 = arith.addf %32, %31 : vector<32x64xf32>
    %34 = arith.mulf %18, %33 : vector<32x64xf32>
    %cst_21 = arith.constant 0.0416666679 : f32
    %35 = vector.broadcast %cst_21 : f32 to vector<32x64xf32>
    %36 = arith.addf %35, %34 : vector<32x64xf32>
    %37 = arith.mulf %18, %36 : vector<32x64xf32>
    %cst_22 = arith.constant -5.000000e-01 : f32
    %38 = vector.broadcast %cst_22 : f32 to vector<32x64xf32>
    %39 = arith.addf %38, %37 : vector<32x64xf32>
    %40 = arith.mulf %18, %39 : vector<32x64xf32>
    %cst_23 = arith.constant 1.000000e+00 : f32
    %41 = vector.broadcast %cst_23 : f32 to vector<32x64xf32>
    %42 = arith.addf %41, %40 : vector<32x64xf32>
    %cst_24 = arith.constant 2.500000e-01 : f32
    %43 = vector.broadcast %cst_24 : f32 to vector<32x64xf32>
    %44 = arith.mulf %14, %43 : vector<32x64xf32>
    %45 = math.floor %44 : vector<32x64xf32>
    %cst_25 = arith.constant 4.000000e+00 : f32
    %46 = vector.broadcast %cst_25 : f32 to vector<32x64xf32>
    %47 = arith.mulf %46, %45 : vector<32x64xf32>
    %48 = arith.subf %14, %47 : vector<32x64xf32>
    %cst_26 = arith.constant 1.000000e+00 : f32
    %49 = vector.broadcast %cst_26 : f32 to vector<32x64xf32>
    %50 = arith.cmpf oeq, %48, %49 : vector<32x64xf32>
    %cst_27 = arith.constant 3.000000e+00 : f32
    %51 = vector.broadcast %cst_27 : f32 to vector<32x64xf32>
    %52 = arith.cmpf oeq, %48, %51 : vector<32x64xf32>
    %53 = arith.ori %50, %52 : vector<32x64xi1>
    %cst_28 = arith.constant 2.000000e+00 : f32
    %54 = vector.broadcast %cst_28 : f32 to vector<32x64xf32>
    %55 = arith.cmpf oeq, %48, %54 : vector<32x64xf32>
    %cst_29 = arith.constant 3.000000e+00 : f32
    %56 = vector.broadcast %cst_29 : f32 to vector<32x64xf32>
    %57 = arith.cmpf oeq, %48, %56 : vector<32x64xf32>
    %58 = arith.ori %55, %57 : vector<32x64xi1>
    %cst_30 = arith.constant 1.000000e+00 : f32
    %59 = vector.broadcast %cst_30 : f32 to vector<32x64xf32>
    %60 = arith.cmpf oeq, %48, %59 : vector<32x64xf32>
    %cst_31 = arith.constant 2.000000e+00 : f32
    %61 = vector.broadcast %cst_31 : f32 to vector<32x64xf32>
    %62 = arith.cmpf oeq, %48, %61 : vector<32x64xf32>
    %63 = arith.ori %60, %62 : vector<32x64xi1>
    %64 = arith.select %53, %42, %29 : vector<32x64xi1>, vector<32x64xf32>
    %65 = arith.select %53, %29, %42 : vector<32x64xi1>, vector<32x64xf32>
    %cst_32 = arith.constant 0.000000e+00 : f32
    %66 = vector.broadcast %cst_32 : f32 to vector<32x64xf32>
    %67 = arith.subf %66, %64 : vector<32x64xf32>
    %68 = arith.select %58, %67, %64 : vector<32x64xi1>, vector<32x64xf32>
    %cst_33 = arith.constant 0.000000e+00 : f32
    %69 = vector.broadcast %cst_33 : f32 to vector<32x64xf32>
    %70 = arith.subf %69, %65 : vector<32x64xf32>
    %71 = arith.select %63, %70, %65 : vector<32x64xi1>, vector<32x64xf32>
    %72 = tpu.iota {dimensions = array<i32: 1>} : vector<32x64xi32>
    %c3_i32 = arith.constant 3 : i32
    %73 = vector.broadcast %c3_i32 : i32 to vector<32x64xi32>
    %74 = arith.cmpi slt, %72, %73 : vector<32x64xi32>
    %c27_i32 = arith.constant 27 : i32
    %75 = vector.broadcast %c27_i32 : i32 to vector<32x64xi32>
    %76 = arith.cmpi slt, %72, %75 : vector<32x64xi32>
    %c51_i32 = arith.constant 51 : i32
    %77 = vector.broadcast %c51_i32 : i32 to vector<32x64xi32>
    %78 = arith.cmpi slt, %72, %77 : vector<32x64xi32>
    %cst_34 = arith.constant 0.000000e+00 : f32
    %79 = vector.broadcast %cst_34 : f32 to vector<32x64xf32>
    %80 = arith.select %78, %71, %79 : vector<32x64xi1>, vector<32x64xf32>
    %81 = arith.select %76, %68, %80 : vector<32x64xi1>, vector<32x64xf32>
    %82 = arith.select %74, %9, %81 : vector<32x64xi1>, vector<32x64xf32>
    %c0_35 = arith.constant 0 : index
    %c0_36 = arith.constant 0 : index
    %83 = vector.load %arg1[%c0_35, %c0_36] : memref<16x32xf32, #tpu.memory_space<vmem>>, vector<16x32xf32>
    %84 = arith.truncf %82 : vector<32x64xf32> to vector<32x64xbf16>
    %cst_37 = arith.constant dense<0.000000e+00> : vector<32x32xf32>
    %85 = tpu.matmul %84, %0, %cst_37 {dimension_numbers = #tpu.dot_dimension_numbers<[1], [0], [0], [1], [0, 0, 1, 1], [], []>} : vector<32x64xbf16>, vector<64x32xbf16>, vector<32x32xf32> -> vector<32x32xf32>
    %c0_38 = arith.constant 0 : index
    %c0_39 = arith.constant 0 : index
    %86 = vector.load %arg4[%c0_38, %c0_39] : memref<128x128xf32, #tpu.memory_space<vmem>>, vector<1x32xf32>
    %87 = vector.broadcast %86 : vector<1x32xf32> to vector<32x32xf32>
    %88 = arith.addf %85, %87 : vector<32x32xf32>
    %c8 = arith.constant 8 : index
    %c0_40 = arith.constant 0 : index
    %89 = vector.load %arg4[%c8, %c0_40] : memref<128x128xf32, #tpu.memory_space<vmem>>, vector<1x32xf32>
    %c16 = arith.constant 16 : index
    %c0_41 = arith.constant 0 : index
    %90 = vector.load %arg4[%c16, %c0_41] : memref<128x128xf32, #tpu.memory_space<vmem>>, vector<1x32xf32>
    %cst_42 = arith.constant dense<0.000000e+00> : vector<32xf32>
    %91 = vector.multi_reduction <add>, %88, %cst_42 [1] : vector<32x32xf32> to vector<32xf32>
    %92 = vector.shape_cast %91 : vector<32xf32> to vector<32x1xf32>
    %cst_43 = arith.constant 3.200000e+01 : f32
    %93 = vector.broadcast %cst_43 : f32 to vector<32x1xf32>
    %94 = arith.divf %92, %93 : vector<32x1xf32>
    %95 = vector.broadcast %94 : vector<32x1xf32> to vector<32x32xf32>
    %96 = arith.subf %88, %95 : vector<32x32xf32>
    %97 = arith.mulf %96, %96 : vector<32x32xf32>
    %cst_44 = arith.constant dense<0.000000e+00> : vector<32xf32>
    %98 = vector.multi_reduction <add>, %97, %cst_44 [1] : vector<32x32xf32> to vector<32xf32>
    %99 = vector.shape_cast %98 : vector<32xf32> to vector<32x1xf32>
    %cst_45 = arith.constant 3.200000e+01 : f32
    %100 = vector.broadcast %cst_45 : f32 to vector<32x1xf32>
    %101 = arith.divf %99, %100 : vector<32x1xf32>
    %cst_46 = arith.constant 9.99999974E-6 : f32
    %102 = vector.broadcast %cst_46 : f32 to vector<32x1xf32>
    %103 = arith.addf %101, %102 : vector<32x1xf32>
    %104 = math.rsqrt %103 : vector<32x1xf32>
    %105 = vector.broadcast %104 : vector<32x1xf32> to vector<32x32xf32>
    %106 = arith.mulf %96, %105 : vector<32x32xf32>
    %107 = vector.broadcast %89 : vector<1x32xf32> to vector<32x32xf32>
    %108 = arith.mulf %106, %107 : vector<32x32xf32>
    %109 = vector.broadcast %90 : vector<1x32xf32> to vector<32x32xf32>
    %110 = arith.addf %108, %109 : vector<32x32xf32>
    %c24 = arith.constant 24 : index
    %c0_47 = arith.constant 0 : index
    %111 = vector.load %arg4[%c24, %c0_47] : memref<128x128xf32, #tpu.memory_space<vmem>>, vector<1x32xf32>
    %c32 = arith.constant 32 : index
    %c0_48 = arith.constant 0 : index
    %112 = vector.load %arg4[%c32, %c0_48] : memref<128x128xf32, #tpu.memory_space<vmem>>, vector<1x32xf32>
    %cst_49 = arith.constant dense<0.000000e+00> : vector<16xf32>
    %113 = vector.multi_reduction <add>, %83, %cst_49 [1] : vector<16x32xf32> to vector<16xf32>
    %114 = vector.shape_cast %113 : vector<16xf32> to vector<16x1xf32>
    %cst_50 = arith.constant 3.200000e+01 : f32
    %115 = vector.broadcast %cst_50 : f32 to vector<16x1xf32>
    %116 = arith.divf %114, %115 : vector<16x1xf32>
    %117 = vector.broadcast %116 : vector<16x1xf32> to vector<16x32xf32>
    %118 = arith.subf %83, %117 : vector<16x32xf32>
    %119 = arith.mulf %118, %118 : vector<16x32xf32>
    %cst_51 = arith.constant dense<0.000000e+00> : vector<16xf32>
    %120 = vector.multi_reduction <add>, %119, %cst_51 [1] : vector<16x32xf32> to vector<16xf32>
    %121 = vector.shape_cast %120 : vector<16xf32> to vector<16x1xf32>
    %cst_52 = arith.constant 3.200000e+01 : f32
    %122 = vector.broadcast %cst_52 : f32 to vector<16x1xf32>
    %123 = arith.divf %121, %122 : vector<16x1xf32>
    %cst_53 = arith.constant 9.99999974E-6 : f32
    %124 = vector.broadcast %cst_53 : f32 to vector<16x1xf32>
    %125 = arith.addf %123, %124 : vector<16x1xf32>
    %126 = math.rsqrt %125 : vector<16x1xf32>
    %127 = vector.broadcast %126 : vector<16x1xf32> to vector<16x32xf32>
    %128 = arith.mulf %118, %127 : vector<16x32xf32>
    %129 = vector.broadcast %111 : vector<1x32xf32> to vector<16x32xf32>
    %130 = arith.mulf %128, %129 : vector<16x32xf32>
    %131 = vector.broadcast %112 : vector<1x32xf32> to vector<16x32xf32>
    %132 = arith.addf %130, %131 : vector<16x32xf32>
    %133 = arith.truncf %110 : vector<32x32xf32> to vector<32x32xbf16>
    %cst_54 = arith.constant dense<0.000000e+00> : vector<32x32xf32>
    %134 = tpu.matmul %133, %1, %cst_54 {dimension_numbers = #tpu.dot_dimension_numbers<[1], [0], [0], [1], [0, 0, 1, 1], [], []>} : vector<32x32xbf16>, vector<32x32xbf16>, vector<32x32xf32> -> vector<32x32xf32>
    %c40 = arith.constant 40 : index
    %c0_55 = arith.constant 0 : index
    %135 = vector.load %arg4[%c40, %c0_55] : memref<128x128xf32, #tpu.memory_space<vmem>>, vector<1x32xf32>
    %136 = vector.broadcast %135 : vector<1x32xf32> to vector<32x32xf32>
    %137 = arith.addf %134, %136 : vector<32x32xf32>
    %138 = arith.truncf %132 : vector<16x32xf32> to vector<16x32xbf16>
    %cst_56 = arith.constant dense<0.000000e+00> : vector<16x64xf32>
    %139 = tpu.matmul %138, %5, %cst_56 {dimension_numbers = #tpu.dot_dimension_numbers<[1], [0], [0], [1], [0, 0, 1, 1], [], []>} : vector<16x32xbf16>, vector<32x64xbf16>, vector<16x64xf32> -> vector<16x64xf32>
    %c48 = arith.constant 48 : index
    %c0_57 = arith.constant 0 : index
    %140 = vector.load %arg4[%c48, %c0_57] : memref<128x128xf32, #tpu.memory_space<vmem>>, vector<1x64xf32>
    %141 = vector.broadcast %140 : vector<1x64xf32> to vector<16x64xf32>
    %142 = arith.addf %139, %141 : vector<16x64xf32>
    %143 = arith.truncf %137 : vector<32x32xf32> to vector<32x32xbf16>
    %144 = arith.truncf %142 : vector<16x64xf32> to vector<16x64xbf16>
    %145 = tpu.iota {dimensions = array<i32: 0>} : vector<32x16xi32>
    %146 = tpu.iota {dimensions = array<i32: 1>} : vector<32x16xi32>
    %false = arith.constant false
    %147 = vector.broadcast %false : i1 to vector<32x16xi1>
    %c0_i32 = arith.constant 0 : i32
    %148 = vector.broadcast %c0_i32 : i32 to vector<32x16xi32>
    %149 = arith.cmpi sge, %145, %148 : vector<32x16xi32>
    %c16_i32 = arith.constant 16 : i32
    %150 = vector.broadcast %c16_i32 : i32 to vector<32x16xi32>
    %151 = arith.cmpi slt, %145, %150 : vector<32x16xi32>
    %152 = arith.andi %149, %151 : vector<32x16xi1>
    %c0_i32_58 = arith.constant 0 : i32
    %153 = vector.broadcast %c0_i32_58 : i32 to vector<32x16xi32>
    %154 = arith.cmpi sge, %146, %153 : vector<32x16xi32>
    %c8_i32 = arith.constant 8 : i32
    %155 = vector.broadcast %c8_i32 : i32 to vector<32x16xi32>
    %156 = arith.cmpi slt, %146, %155 : vector<32x16xi32>
    %157 = arith.andi %154, %156 : vector<32x16xi1>
    %158 = arith.andi %152, %157 : vector<32x16xi1>
    %159 = arith.ori %147, %158 : vector<32x16xi1>
    %c16_i32_59 = arith.constant 16 : i32
    %160 = vector.broadcast %c16_i32_59 : i32 to vector<32x16xi32>
    %161 = arith.cmpi sge, %145, %160 : vector<32x16xi32>
    %c32_i32 = arith.constant 32 : i32
    %162 = vector.broadcast %c32_i32 : i32 to vector<32x16xi32>
    %163 = arith.cmpi slt, %145, %162 : vector<32x16xi32>
    %164 = arith.andi %161, %163 : vector<32x16xi1>
    %c8_i32_60 = arith.constant 8 : i32
    %165 = vector.broadcast %c8_i32_60 : i32 to vector<32x16xi32>
    %166 = arith.cmpi sge, %146, %165 : vector<32x16xi32>
    %c16_i32_61 = arith.constant 16 : i32
    %167 = vector.broadcast %c16_i32_61 : i32 to vector<32x16xi32>
    %168 = arith.cmpi slt, %146, %167 : vector<32x16xi32>
    %169 = arith.andi %166, %168 : vector<32x16xi1>
    %170 = arith.andi %164, %169 : vector<32x16xi1>
    %171 = arith.ori %159, %170 : vector<32x16xi1>
    %cst_62 = arith.constant 0.000000e+00 : f32
    %cst_63 = arith.constant -1.000000e+30 : f32
    %172 = vector.broadcast %cst_62 : f32 to vector<32x16xf32>
    %173 = vector.broadcast %cst_63 : f32 to vector<32x16xf32>
    %174 = arith.select %171, %172, %173 : vector<32x16xi1>, vector<32x16xf32>
    %cst_64 = arith.constant 0.000000e+00 : f32
    %175 = vector.broadcast %cst_64 : f32 to vector<32x32xf32>
    %176 = vector.extract_strided_slice %143 {offsets = [0, 0], sizes = [32, 8], strides = [1, 1]} : vector<32x32xbf16> to vector<32x8xbf16>
    %177 = vector.extract_strided_slice %144 {offsets = [0, 0], sizes = [16, 8], strides = [1, 1]} : vector<16x64xbf16> to vector<16x8xbf16>
    %178 = vector.extract_strided_slice %144 {offsets = [0, 8], sizes = [16, 8], strides = [1, 1]} : vector<16x64xbf16> to vector<16x8xbf16>
    %cst_65 = arith.constant dense<0.000000e+00> : vector<32x16xf32>
    %179 = tpu.matmul %176, %177, %cst_65 {dimension_numbers = #tpu.dot_dimension_numbers<[1], [1], [0], [0], [0, 0, 1, 0], [], []>} : vector<32x8xbf16>, vector<16x8xbf16>, vector<32x16xf32> -> vector<32x16xf32>
    %180 = arith.addf %179, %174 : vector<32x16xf32>
    %cst_66 = arith.constant dense<0xFF800000> : vector<32xf32>
    %181 = vector.multi_reduction <maximumf>, %180, %cst_66 [1] : vector<32x16xf32> to vector<32xf32>
    %182 = vector.shape_cast %181 : vector<32xf32> to vector<32x1xf32>
    %183 = vector.broadcast %182 : vector<32x1xf32> to vector<32x16xf32>
    %184 = arith.subf %180, %183 : vector<32x16xf32>
    %185 = math.exp %184 : vector<32x16xf32>
    %cst_67 = arith.constant dense<0.000000e+00> : vector<32xf32>
    %186 = vector.multi_reduction <add>, %185, %cst_67 [1] : vector<32x16xf32> to vector<32xf32>
    %187 = vector.shape_cast %186 : vector<32xf32> to vector<32x1xf32>
    %188 = tpu.reciprocal %187 {approx = true} : vector<32x1xf32> -> vector<32x1xf32>
    %189 = vector.broadcast %188 : vector<32x1xf32> to vector<32x16xf32>
    %190 = arith.mulf %185, %189 : vector<32x16xf32>
    %191 = arith.truncf %190 : vector<32x16xf32> to vector<32x16xbf16>
    %cst_68 = arith.constant dense<0.000000e+00> : vector<32x8xf32>
    %192 = tpu.matmul %191, %178, %cst_68 {dimension_numbers = #tpu.dot_dimension_numbers<[1], [0], [0], [1], [0, 0, 1, 1], [], []>} : vector<32x16xbf16>, vector<16x8xbf16>, vector<32x8xf32> -> vector<32x8xf32>
    %193 = arith.truncf %192 : vector<32x8xf32> to vector<32x8xbf16>
    %194 = vector.extract_strided_slice %2 {offsets = [0, 0], sizes = [8, 32], strides = [1, 1]} : vector<32x32xbf16> to vector<8x32xbf16>
    %cst_69 = arith.constant dense<0.000000e+00> : vector<32x32xf32>
    %195 = tpu.matmul %193, %194, %cst_69 {dimension_numbers = #tpu.dot_dimension_numbers<[1], [0], [0], [1], [0, 0, 1, 1], [], []>} : vector<32x8xbf16>, vector<8x32xbf16>, vector<32x32xf32> -> vector<32x32xf32>
    %196 = arith.addf %175, %195 : vector<32x32xf32>
    %197 = vector.extract_strided_slice %143 {offsets = [0, 8], sizes = [32, 8], strides = [1, 1]} : vector<32x32xbf16> to vector<32x8xbf16>
    %198 = vector.extract_strided_slice %144 {offsets = [0, 16], sizes = [16, 8], strides = [1, 1]} : vector<16x64xbf16> to vector<16x8xbf16>
    %199 = vector.extract_strided_slice %144 {offsets = [0, 24], sizes = [16, 8], strides = [1, 1]} : vector<16x64xbf16> to vector<16x8xbf16>
    %cst_70 = arith.constant dense<0.000000e+00> : vector<32x16xf32>
    %200 = tpu.matmul %197, %198, %cst_70 {dimension_numbers = #tpu.dot_dimension_numbers<[1], [1], [0], [0], [0, 0, 1, 0], [], []>} : vector<32x8xbf16>, vector<16x8xbf16>, vector<32x16xf32> -> vector<32x16xf32>
    %201 = arith.addf %200, %174 : vector<32x16xf32>
    %cst_71 = arith.constant dense<0xFF800000> : vector<32xf32>
    %202 = vector.multi_reduction <maximumf>, %201, %cst_71 [1] : vector<32x16xf32> to vector<32xf32>
    %203 = vector.shape_cast %202 : vector<32xf32> to vector<32x1xf32>
    %204 = vector.broadcast %203 : vector<32x1xf32> to vector<32x16xf32>
    %205 = arith.subf %201, %204 : vector<32x16xf32>
    %206 = math.exp %205 : vector<32x16xf32>
    %cst_72 = arith.constant dense<0.000000e+00> : vector<32xf32>
    %207 = vector.multi_reduction <add>, %206, %cst_72 [1] : vector<32x16xf32> to vector<32xf32>
    %208 = vector.shape_cast %207 : vector<32xf32> to vector<32x1xf32>
    %209 = tpu.reciprocal %208 {approx = true} : vector<32x1xf32> -> vector<32x1xf32>
    %210 = vector.broadcast %209 : vector<32x1xf32> to vector<32x16xf32>
    %211 = arith.mulf %206, %210 : vector<32x16xf32>
    %212 = arith.truncf %211 : vector<32x16xf32> to vector<32x16xbf16>
    %cst_73 = arith.constant dense<0.000000e+00> : vector<32x8xf32>
    %213 = tpu.matmul %212, %199, %cst_73 {dimension_numbers = #tpu.dot_dimension_numbers<[1], [0], [0], [1], [0, 0, 1, 1], [], []>} : vector<32x16xbf16>, vector<16x8xbf16>, vector<32x8xf32> -> vector<32x8xf32>
    %214 = arith.truncf %213 : vector<32x8xf32> to vector<32x8xbf16>
    %215 = vector.extract_strided_slice %2 {offsets = [8, 0], sizes = [8, 32], strides = [1, 1]} : vector<32x32xbf16> to vector<8x32xbf16>
    %cst_74 = arith.constant dense<0.000000e+00> : vector<32x32xf32>
    %216 = tpu.matmul %214, %215, %cst_74 {dimension_numbers = #tpu.dot_dimension_numbers<[1], [0], [0], [1], [0, 0, 1, 1], [], []>} : vector<32x8xbf16>, vector<8x32xbf16>, vector<32x32xf32> -> vector<32x32xf32>
    %217 = arith.addf %196, %216 : vector<32x32xf32>
    %218 = vector.extract_strided_slice %143 {offsets = [0, 16], sizes = [32, 8], strides = [1, 1]} : vector<32x32xbf16> to vector<32x8xbf16>
    %219 = vector.extract_strided_slice %144 {offsets = [0, 32], sizes = [16, 8], strides = [1, 1]} : vector<16x64xbf16> to vector<16x8xbf16>
    %220 = vector.extract_strided_slice %144 {offsets = [0, 40], sizes = [16, 8], strides = [1, 1]} : vector<16x64xbf16> to vector<16x8xbf16>
    %cst_75 = arith.constant dense<0.000000e+00> : vector<32x16xf32>
    %221 = tpu.matmul %218, %219, %cst_75 {dimension_numbers = #tpu.dot_dimension_numbers<[1], [1], [0], [0], [0, 0, 1, 0], [], []>} : vector<32x8xbf16>, vector<16x8xbf16>, vector<32x16xf32> -> vector<32x16xf32>
    %222 = arith.addf %221, %174 : vector<32x16xf32>
    %cst_76 = arith.constant dense<0xFF800000> : vector<32xf32>
    %223 = vector.multi_reduction <maximumf>, %222, %cst_76 [1] : vector<32x16xf32> to vector<32xf32>
    %224 = vector.shape_cast %223 : vector<32xf32> to vector<32x1xf32>
    %225 = vector.broadcast %224 : vector<32x1xf32> to vector<32x16xf32>
    %226 = arith.subf %222, %225 : vector<32x16xf32>
    %227 = math.exp %226 : vector<32x16xf32>
    %cst_77 = arith.constant dense<0.000000e+00> : vector<32xf32>
    %228 = vector.multi_reduction <add>, %227, %cst_77 [1] : vector<32x16xf32> to vector<32xf32>
    %229 = vector.shape_cast %228 : vector<32xf32> to vector<32x1xf32>
    %230 = tpu.reciprocal %229 {approx = true} : vector<32x1xf32> -> vector<32x1xf32>
    %231 = vector.broadcast %230 : vector<32x1xf32> to vector<32x16xf32>
    %232 = arith.mulf %227, %231 : vector<32x16xf32>
    %233 = arith.truncf %232 : vector<32x16xf32> to vector<32x16xbf16>
    %cst_78 = arith.constant dense<0.000000e+00> : vector<32x8xf32>
    %234 = tpu.matmul %233, %220, %cst_78 {dimension_numbers = #tpu.dot_dimension_numbers<[1], [0], [0], [1], [0, 0, 1, 1], [], []>} : vector<32x16xbf16>, vector<16x8xbf16>, vector<32x8xf32> -> vector<32x8xf32>
    %235 = arith.truncf %234 : vector<32x8xf32> to vector<32x8xbf16>
    %236 = vector.extract_strided_slice %2 {offsets = [16, 0], sizes = [8, 32], strides = [1, 1]} : vector<32x32xbf16> to vector<8x32xbf16>
    %cst_79 = arith.constant dense<0.000000e+00> : vector<32x32xf32>
    %237 = tpu.matmul %235, %236, %cst_79 {dimension_numbers = #tpu.dot_dimension_numbers<[1], [0], [0], [1], [0, 0, 1, 1], [], []>} : vector<32x8xbf16>, vector<8x32xbf16>, vector<32x32xf32> -> vector<32x32xf32>
    %238 = arith.addf %217, %237 : vector<32x32xf32>
    %239 = vector.extract_strided_slice %143 {offsets = [0, 24], sizes = [32, 8], strides = [1, 1]} : vector<32x32xbf16> to vector<32x8xbf16>
    %240 = vector.extract_strided_slice %144 {offsets = [0, 48], sizes = [16, 8], strides = [1, 1]} : vector<16x64xbf16> to vector<16x8xbf16>
    %241 = vector.extract_strided_slice %144 {offsets = [0, 56], sizes = [16, 8], strides = [1, 1]} : vector<16x64xbf16> to vector<16x8xbf16>
    %cst_80 = arith.constant dense<0.000000e+00> : vector<32x16xf32>
    %242 = tpu.matmul %239, %240, %cst_80 {dimension_numbers = #tpu.dot_dimension_numbers<[1], [1], [0], [0], [0, 0, 1, 0], [], []>} : vector<32x8xbf16>, vector<16x8xbf16>, vector<32x16xf32> -> vector<32x16xf32>
    %243 = arith.addf %242, %174 : vector<32x16xf32>
    %cst_81 = arith.constant dense<0xFF800000> : vector<32xf32>
    %244 = vector.multi_reduction <maximumf>, %243, %cst_81 [1] : vector<32x16xf32> to vector<32xf32>
    %245 = vector.shape_cast %244 : vector<32xf32> to vector<32x1xf32>
    %246 = vector.broadcast %245 : vector<32x1xf32> to vector<32x16xf32>
    %247 = arith.subf %243, %246 : vector<32x16xf32>
    %248 = math.exp %247 : vector<32x16xf32>
    %cst_82 = arith.constant dense<0.000000e+00> : vector<32xf32>
    %249 = vector.multi_reduction <add>, %248, %cst_82 [1] : vector<32x16xf32> to vector<32xf32>
    %250 = vector.shape_cast %249 : vector<32xf32> to vector<32x1xf32>
    %251 = tpu.reciprocal %250 {approx = true} : vector<32x1xf32> -> vector<32x1xf32>
    %252 = vector.broadcast %251 : vector<32x1xf32> to vector<32x16xf32>
    %253 = arith.mulf %248, %252 : vector<32x16xf32>
    %254 = arith.truncf %253 : vector<32x16xf32> to vector<32x16xbf16>
    %cst_83 = arith.constant dense<0.000000e+00> : vector<32x8xf32>
    %255 = tpu.matmul %254, %241, %cst_83 {dimension_numbers = #tpu.dot_dimension_numbers<[1], [0], [0], [1], [0, 0, 1, 1], [], []>} : vector<32x16xbf16>, vector<16x8xbf16>, vector<32x8xf32> -> vector<32x8xf32>
    %256 = arith.truncf %255 : vector<32x8xf32> to vector<32x8xbf16>
    %257 = vector.extract_strided_slice %2 {offsets = [24, 0], sizes = [8, 32], strides = [1, 1]} : vector<32x32xbf16> to vector<8x32xbf16>
    %cst_84 = arith.constant dense<0.000000e+00> : vector<32x32xf32>
    %258 = tpu.matmul %256, %257, %cst_84 {dimension_numbers = #tpu.dot_dimension_numbers<[1], [0], [0], [1], [0, 0, 1, 1], [], []>} : vector<32x8xbf16>, vector<8x32xbf16>, vector<32x32xf32> -> vector<32x32xf32>
    %259 = arith.addf %238, %258 : vector<32x32xf32>
    %260 = arith.addf %88, %259 : vector<32x32xf32>
    %c56 = arith.constant 56 : index
    %c0_85 = arith.constant 0 : index
    %261 = vector.load %arg4[%c56, %c0_85] : memref<128x128xf32, #tpu.memory_space<vmem>>, vector<1x32xf32>
    %262 = vector.broadcast %261 : vector<1x32xf32> to vector<32x32xf32>
    %263 = arith.addf %260, %262 : vector<32x32xf32>
    %c64_86 = arith.constant 64 : index
    %c0_87 = arith.constant 0 : index
    %264 = vector.load %arg4[%c64_86, %c0_87] : memref<128x128xf32, #tpu.memory_space<vmem>>, vector<1x32xf32>
    %c72 = arith.constant 72 : index
    %c0_88 = arith.constant 0 : index
    %265 = vector.load %arg4[%c72, %c0_88] : memref<128x128xf32, #tpu.memory_space<vmem>>, vector<1x32xf32>
    %cst_89 = arith.constant dense<0.000000e+00> : vector<32xf32>
    %266 = vector.multi_reduction <add>, %263, %cst_89 [1] : vector<32x32xf32> to vector<32xf32>
    %267 = vector.shape_cast %266 : vector<32xf32> to vector<32x1xf32>
    %cst_90 = arith.constant 3.200000e+01 : f32
    %268 = vector.broadcast %cst_90 : f32 to vector<32x1xf32>
    %269 = arith.divf %267, %268 : vector<32x1xf32>
    %270 = vector.broadcast %269 : vector<32x1xf32> to vector<32x32xf32>
    %271 = arith.subf %263, %270 : vector<32x32xf32>
    %272 = arith.mulf %271, %271 : vector<32x32xf32>
    %cst_91 = arith.constant dense<0.000000e+00> : vector<32xf32>
    %273 = vector.multi_reduction <add>, %272, %cst_91 [1] : vector<32x32xf32> to vector<32xf32>
    %274 = vector.shape_cast %273 : vector<32xf32> to vector<32x1xf32>
    %cst_92 = arith.constant 3.200000e+01 : f32
    %275 = vector.broadcast %cst_92 : f32 to vector<32x1xf32>
    %276 = arith.divf %274, %275 : vector<32x1xf32>
    %cst_93 = arith.constant 9.99999974E-6 : f32
    %277 = vector.broadcast %cst_93 : f32 to vector<32x1xf32>
    %278 = arith.addf %276, %277 : vector<32x1xf32>
    %279 = math.rsqrt %278 : vector<32x1xf32>
    %280 = vector.broadcast %279 : vector<32x1xf32> to vector<32x32xf32>
    %281 = arith.mulf %271, %280 : vector<32x32xf32>
    %282 = vector.broadcast %264 : vector<1x32xf32> to vector<32x32xf32>
    %283 = arith.mulf %281, %282 : vector<32x32xf32>
    %284 = vector.broadcast %265 : vector<1x32xf32> to vector<32x32xf32>
    %285 = arith.addf %283, %284 : vector<32x32xf32>
    %286 = arith.truncf %285 : vector<32x32xf32> to vector<32x32xbf16>
    %cst_94 = arith.constant dense<0.000000e+00> : vector<32x128xf32>
    %287 = tpu.matmul %286, %4, %cst_94 {dimension_numbers = #tpu.dot_dimension_numbers<[1], [0], [0], [1], [0, 0, 1, 1], [], []>} : vector<32x32xbf16>, vector<32x128xbf16>, vector<32x128xf32> -> vector<32x128xf32>
    %c80 = arith.constant 80 : index
    %c0_95 = arith.constant 0 : index
    %288 = vector.load %arg4[%c80, %c0_95] : memref<128x128xf32, #tpu.memory_space<vmem>>, vector<1x128xf32>
    %289 = vector.broadcast %288 : vector<1x128xf32> to vector<32x128xf32>
    %290 = arith.addf %287, %289 : vector<32x128xf32>
    %cst_96 = arith.constant 5.000000e-01 : f32
    %291 = vector.broadcast %cst_96 : f32 to vector<32x128xf32>
    %292 = arith.mulf %291, %290 : vector<32x128xf32>
    %cst_97 = arith.constant 0.707106769 : f32
    %293 = vector.broadcast %cst_97 : f32 to vector<32x128xf32>
    %294 = arith.mulf %290, %293 : vector<32x128xf32>
    %cst_98 = arith.constant -4.000000e+00 : f32
    %cst_99 = arith.constant 4.000000e+00 : f32
    %295 = vector.broadcast %cst_98 : f32 to vector<32x128xf32>
    %296 = arith.maximumf %295, %294 : vector<32x128xf32>
    %297 = vector.broadcast %cst_99 : f32 to vector<32x128xf32>
    %298 = arith.minimumf %297, %296 : vector<32x128xf32>
    %299 = arith.mulf %298, %298 : vector<32x128xf32>
    %cst_100 = arith.constant -2.72614237E-10 : f32
    %300 = vector.broadcast %cst_100 : f32 to vector<32x128xf32>
    %301 = arith.mulf %300, %299 : vector<32x128xf32>
    %cst_101 = arith.constant 2.77068146E-8 : f32
    %302 = vector.broadcast %cst_101 : f32 to vector<32x128xf32>
    %303 = arith.addf %301, %302 : vector<32x128xf32>
    %304 = arith.mulf %303, %299 : vector<32x128xf32>
    %cst_102 = arith.constant -2.10102394E-6 : f32
    %305 = vector.broadcast %cst_102 : f32 to vector<32x128xf32>
    %306 = arith.addf %304, %305 : vector<32x128xf32>
    %307 = arith.mulf %306, %299 : vector<32x128xf32>
    %cst_103 = arith.constant -5.69250624E-5 : f32
    %308 = vector.broadcast %cst_103 : f32 to vector<32x128xf32>
    %309 = arith.addf %307, %308 : vector<32x128xf32>
    %310 = arith.mulf %309, %299 : vector<32x128xf32>
    %cst_104 = arith.constant -7.34990637E-4 : f32
    %311 = vector.broadcast %cst_104 : f32 to vector<32x128xf32>
    %312 = arith.addf %310, %311 : vector<32x128xf32>
    %313 = arith.mulf %312, %299 : vector<32x128xf32>
    %cst_105 = arith.constant -2.954600e-03 : f32
    %314 = vector.broadcast %cst_105 : f32 to vector<32x128xf32>
    %315 = arith.addf %313, %314 : vector<32x128xf32>
    %316 = arith.mulf %315, %299 : vector<32x128xf32>
    %cst_106 = arith.constant -0.0160960332 : f32
    %317 = vector.broadcast %cst_106 : f32 to vector<32x128xf32>
    %318 = arith.addf %316, %317 : vector<32x128xf32>
    %319 = arith.mulf %298, %318 : vector<32x128xf32>
    %cst_107 = arith.constant -1.45660715E-5 : f32
    %320 = vector.broadcast %cst_107 : f32 to vector<32x128xf32>
    %321 = arith.mulf %320, %299 : vector<32x128xf32>
    %cst_108 = arith.constant -2.13374049E-4 : f32
    %322 = vector.broadcast %cst_108 : f32 to vector<32x128xf32>
    %323 = arith.addf %321, %322 : vector<32x128xf32>
    %324 = arith.mulf %323, %299 : vector<32x128xf32>
    %cst_109 = arith.constant -0.00168282702 : f32
    %325 = vector.broadcast %cst_109 : f32 to vector<32x128xf32>
    %326 = arith.addf %324, %325 : vector<32x128xf32>
    %327 = arith.mulf %326, %299 : vector<32x128xf32>
    %cst_110 = arith.constant -0.00737332925 : f32
    %328 = vector.broadcast %cst_110 : f32 to vector<32x128xf32>
    %329 = arith.addf %327, %328 : vector<32x128xf32>
    %330 = arith.mulf %329, %299 : vector<32x128xf32>
    %cst_111 = arith.constant -0.0142647391 : f32
    %331 = vector.broadcast %cst_111 : f32 to vector<32x128xf32>
    %332 = arith.addf %330, %331 : vector<32x128xf32>
    %333 = tpu.reciprocal %332 {approx = true} : vector<32x128xf32> -> vector<32x128xf32>
    %334 = arith.mulf %319, %333 : vector<32x128xf32>
    %cst_112 = arith.constant 1.000000e+00 : f32
    %335 = vector.broadcast %cst_112 : f32 to vector<32x128xf32>
    %336 = arith.addf %335, %334 : vector<32x128xf32>
    %337 = arith.mulf %292, %336 : vector<32x128xf32>
    %338 = arith.truncf %337 : vector<32x128xf32> to vector<32x128xbf16>
    %cst_113 = arith.constant dense<0.000000e+00> : vector<32x32xf32>
    %339 = tpu.matmul %338, %3, %cst_113 {dimension_numbers = #tpu.dot_dimension_numbers<[1], [0], [0], [1], [0, 0, 1, 1], [], []>} : vector<32x128xbf16>, vector<128x32xbf16>, vector<32x32xf32> -> vector<32x32xf32>
    %340 = arith.addf %263, %339 : vector<32x32xf32>
    %c88 = arith.constant 88 : index
    %c0_114 = arith.constant 0 : index
    %341 = vector.load %arg4[%c88, %c0_114] : memref<128x128xf32, #tpu.memory_space<vmem>>, vector<1x32xf32>
    %342 = vector.broadcast %341 : vector<1x32xf32> to vector<32x32xf32>
    %343 = arith.addf %340, %342 : vector<32x32xf32>
    %c96_115 = arith.constant 96 : index
    %c0_116 = arith.constant 0 : index
    %344 = vector.load %arg4[%c96_115, %c0_116] : memref<128x128xf32, #tpu.memory_space<vmem>>, vector<1x32xf32>
    %c104 = arith.constant 104 : index
    %c0_117 = arith.constant 0 : index
    %345 = vector.load %arg4[%c104, %c0_117] : memref<128x128xf32, #tpu.memory_space<vmem>>, vector<1x32xf32>
    %cst_118 = arith.constant dense<0.000000e+00> : vector<32xf32>
    %346 = vector.multi_reduction <add>, %343, %cst_118 [1] : vector<32x32xf32> to vector<32xf32>
    %347 = vector.shape_cast %346 : vector<32xf32> to vector<32x1xf32>
    %cst_119 = arith.constant 3.200000e+01 : f32
    %348 = vector.broadcast %cst_119 : f32 to vector<32x1xf32>
    %349 = arith.divf %347, %348 : vector<32x1xf32>
    %350 = vector.broadcast %349 : vector<32x1xf32> to vector<32x32xf32>
    %351 = arith.subf %343, %350 : vector<32x32xf32>
    %352 = arith.mulf %351, %351 : vector<32x32xf32>
    %cst_120 = arith.constant dense<0.000000e+00> : vector<32xf32>
    %353 = vector.multi_reduction <add>, %352, %cst_120 [1] : vector<32x32xf32> to vector<32xf32>
    %354 = vector.shape_cast %353 : vector<32xf32> to vector<32x1xf32>
    %cst_121 = arith.constant 3.200000e+01 : f32
    %355 = vector.broadcast %cst_121 : f32 to vector<32x1xf32>
    %356 = arith.divf %354, %355 : vector<32x1xf32>
    %cst_122 = arith.constant 9.99999974E-6 : f32
    %357 = vector.broadcast %cst_122 : f32 to vector<32x1xf32>
    %358 = arith.addf %356, %357 : vector<32x1xf32>
    %359 = math.rsqrt %358 : vector<32x1xf32>
    %360 = vector.broadcast %359 : vector<32x1xf32> to vector<32x32xf32>
    %361 = arith.mulf %351, %360 : vector<32x32xf32>
    %362 = vector.broadcast %344 : vector<1x32xf32> to vector<32x32xf32>
    %363 = arith.mulf %361, %362 : vector<32x32xf32>
    %364 = vector.broadcast %345 : vector<1x32xf32> to vector<32x32xf32>
    %365 = arith.addf %363, %364 : vector<32x32xf32>
    %366 = arith.truncf %365 : vector<32x32xf32> to vector<32x32xbf16>
    %cst_123 = arith.constant dense<0.000000e+00> : vector<32x128xf32>
    %367 = tpu.matmul %366, %6, %cst_123 {dimension_numbers = #tpu.dot_dimension_numbers<[1], [0], [0], [1], [0, 0, 1, 1], [], []>} : vector<32x32xbf16>, vector<32x128xbf16>, vector<32x128xf32> -> vector<32x128xf32>
    %c112 = arith.constant 112 : index
    %c0_124 = arith.constant 0 : index
    %368 = vector.load %arg4[%c112, %c0_124] : memref<128x128xf32, #tpu.memory_space<vmem>>, vector<1x128xf32>
    %369 = vector.broadcast %368 : vector<1x128xf32> to vector<32x128xf32>
    %370 = arith.addf %367, %369 : vector<32x128xf32>
    %c0_125 = arith.constant 0 : index
    %c0_126 = arith.constant 0 : index
    %371 = vector.load %arg5[%c0_125, %c0_126] : memref<32x128xf32, #tpu.memory_space<vmem>>, vector<32x128xf32>
    tpu.vector_store %arg5[%c0_125, %c0_126], %370 {strides = array<i32>} : memref<32x128xf32, #tpu.memory_space<vmem>>, vector<32x128xf32>,
    return
  }
}

</mosaic_0001>

<llo_original>
// kernel: cross_attention_decoder.1
$region0: #{cross_attention_decoder.1}
  #allocation0 [shape = 'u32[]', space=smem, size = 0x4, offset = 0x4, fixed_abs, tag = 'smem constant byte address 0x4 - core index']
  #allocation1 [shape = 'u32[72,128]{1,0:T(1,128)}', space=vmem, size = 0x9000, scoped, tag = 'internal scratch']
  %s0 = inlined_call_operand.vmem [shape: f32[32,8], index: 0, kind: input, shape index: {}]
  %s1 = inlined_call_operand.vmem [shape: f32[16,32], index: 1, kind: input, shape index: {}]
  %s2 = inlined_call_operand.vmem [shape: bf16[256,32], index: 2, kind: input, shape index: {}]
  %s3 = inlined_call_operand.vmem [shape: bf16[32,384], index: 3, kind: input, shape index: {}]
  %s4 = inlined_call_operand.vmem [shape: f32[128,128], index: 4, kind: input, shape index: {}]
  %s5 = inlined_call_operand.vmem [shape: f32[32,128], index: 5, kind: output, shape index: {}]
  %s6 = sld [smem:[#allocation0]]
  $region30: #{cross_attention_decoder.1} parent=0
    _
  %s8 = ssub.s32 1, %s6
  %s9 = scalar_select 0, %s8, %s6
  // Predicated region
  $region2: #{cross_attention_decoder.1} parent=0 // pred_check
    _
  $region3: #{cross_attention_decoder.1} parent=0 // pred_check_branch
    %11 = sbr.rel (0) target = $region5
  $region4: #{cross_attention_decoder.1} parent=0 // pred_region
    _
  $region5: #{cross_attention_decoder.1} parent=0 // pred_fallthru
    _
  // Predicated region
  $region6: #{cross_attention_decoder.1} parent=0 // pred_check
    _
  $region7: #{cross_attention_decoder.1} parent=0 // pred_check_branch
    %13 = sbr.rel (0) target = $region9
  $region8: #{cross_attention_decoder.1} parent=0 // pred_region
    _
  $region9: #{cross_attention_decoder.1} parent=0 // pred_fallthru
    _
  // Predicated region
  $region10: #{cross_attention_decoder.1} parent=0 // pred_check
    _
  $region11: #{cross_attention_decoder.1} parent=0 // pred_check_branch
    %15 = sbr.rel (0) target = $region13
  $region12: #{cross_attention_decoder.1} parent=0 // pred_region
    _
  $region13: #{cross_attention_decoder.1} parent=0 // pred_fallthru
    _
  // Predicated region
  $region14: #{cross_attention_decoder.1} parent=0 // pred_check
    _
  $region15: #{cross_attention_decoder.1} parent=0 // pred_check_branch
    %17 = sbr.rel (0) target = $region17
  $region16: #{cross_attention_decoder.1} parent=0 // pred_region
    _
  $region17: #{cross_attention_decoder.1} parent=0 // pred_fallthru
    _
  // Predicated region
  $region18: #{cross_attention_decoder.1} parent=0 // pred_check
    _
  $region19: #{cross_attention_decoder.1} parent=0 // pred_check_branch
    %19 = sbr.rel (0) target = $region21
  $region20: #{cross_attention_decoder.1} parent=0 // pred_region
    _
  $region21: #{cross_attention_decoder.1} parent=0 // pred_fallthru
    _
  %v21 = vld [vmem:[%s2] sm:$0xf]
  %v22 = vld [vmem:[%s2 + $0x4] sm:$0xf]
  %v23 = vld [vmem:[%s2 + $0x8] sm:$0xf]
  %v24 = vld [vmem:[%s2 + $0xc] sm:$0xf]
  %v25 = vld [vmem:[%s2 + $0x10] sm:$0xf]
  %v26 = vld [vmem:[%s2 + $0x14] sm:$0xf]
  %v27 = vld [vmem:[%s2 + $0x18] sm:$0xf]
  %v28 = vld [vmem:[%s2 + $0x1c] sm:$0xf]
  %v29 = vld [vmem:[%s2 + $0x20] sm:$0xf]
  %v30 = vld [vmem:[%s2 + $0x24] sm:$0xf]
  %v31 = vld [vmem:[%s2 + $0x28] sm:$0xf]
  %v32 = vld [vmem:[%s2 + $0x2c] sm:$0xf]
  %v33 = vld [vmem:[%s2 + $0x30] sm:$0xf]
  %v34 = vld [vmem:[%s2 + $0x34] sm:$0xf]
  %v35 = vld [vmem:[%s2 + $0x38] sm:$0xf]
  %v36 = vld [vmem:[%s2 + $0x3c] sm:$0xf]
  %v37 = vld [vmem:[%s2 + $0x40] sm:$0xf]
  %v38 = vld [vmem:[%s2 + $0x44] sm:$0xf]
  %v39 = vld [vmem:[%s2 + $0x48] sm:$0xf]
  %v40 = vld [vmem:[%s2 + $0x4c] sm:$0xf]
  %v41 = vld [vmem:[%s2 + $0x50] sm:$0xf]
  %v42 = vld [vmem:[%s2 + $0x54] sm:$0xf]
  %v43 = vld [vmem:[%s2 + $0x58] sm:$0xf]
  %v44 = vld [vmem:[%s2 + $0x5c] sm:$0xf]
  %v45 = vld [vmem:[%s2 + $0x60] sm:$0xf]
  %v46 = vld [vmem:[%s2 + $0x64] sm:$0xf]
  %v47 = vld [vmem:[%s2 + $0x68] sm:$0xf]
  %v48 = vld [vmem:[%s2 + $0x6c] sm:$0xf]
  %v49 = vld [vmem:[%s2 + $0x70] sm:$0xf]
  %v50 = vld [vmem:[%s2 + $0x74] sm:$0xf]
  %v51 = vld [vmem:[%s2 + $0x78] sm:$0xf]
  %v52 = vld [vmem:[%s2 + $0x7c] sm:$0xf]
  %v53 = vld [vmem:[%s3] sm:$0xf]
  %v54 = vld [vmem:[%s3 + $0xc] sm:$0xf]
  %v55 = vld [vmem:[%s3 + $0x18] sm:$0xf]
  %v56 = vld [vmem:[%s3 + $0x24] sm:$0xf]
  %v57 = vld [vmem:[%s3 + $0x4] sm:$0xf]
  %v58 = vld [vmem:[%s3 + $0x10] sm:$0xf]
  %v59 = vld [vmem:[%s3 + $0x1c] sm:$0xf]
  %v60 = vld [vmem:[%s3 + $0x28] sm:$0xf]
  %v61 = vld [vmem:[%s3 + $0x8] sm:$0xf]
  %v62 = vld [vmem:[%s3 + $0x14] sm:$0xf]
  %v63 = vld [vmem:[%s3 + $0x20] sm:$0xf]
  %v64 = vld [vmem:[%s3 + $0x2c] sm:$0xf]
  %v65 = vld [vmem:[%s0] sm:$0xff]
  %v66 = vld [vmem:[%s0 + $0x8] sm:$0xff]
  %v67 = vld [vmem:[%s0 + $0x10] sm:$0xff]
  %v68 = vld [vmem:[%s0 + $0x18] sm:$0xff]
  %v69 = vld [vmem:[%s4 + $0x78] sm:$0xff]
  %vm70 = vcmask 64512
  %v72 = vsel %vm70, %v65, 0
  %v75 = vsel %vm70, %v66, 0
  %v78 = vsel %vm70, %v67, 0
  %v81 = vsel %vm70, %v68, 0
  %83 = vmatpush.msra.mxu0 0.0
  %84 = vmatpush.msra.mxu0 0.0
  %85 = vmatpush.msra.mxu0 0.0
  %86 = vmatpush.msra.mxu0 0.0
  %87 = vmatpush.msra.mxu0 0.0
  %88 = vmatpush.msra.mxu0 0.0
  %89 = vmatpush.msra.mxu0 0.0
  %90 = vmatpush.msra.mxu0 0.0
  %91 = vmatpush.msra.mxu0 0.0
  %92 = vmatpush.msra.mxu0 0.0
  %93 = vmatpush.msra.mxu0 0.0
  %94 = vmatpush.msra.mxu0 0.0
  %95 = vmatpush.msra.mxu0 0.0
  %96 = vmatpush.msra.mxu0 0.0
  %97 = vmatpush.msra.mxu0 0.0
  %98 = vmatpush.msra.mxu0 %v69
  %99 = vmatmul.f32.gmra.mxu0 %v72
  %v100 = vpop.f32.mrf.mxu0
  %v101 = vadd.f32 0.0, %v100
  %102 = vmatmul.f32.gmra.mxu0 %v75
  %v103 = vpop.f32.mrf.mxu0
  %v104 = vadd.f32 0.0, %v103
  %105 = vmatmul.f32.gmra.mxu0 %v78
  %v106 = vpop.f32.mrf.mxu0
  %v107 = vadd.f32 0.0, %v106
  %108 = vmatmul.f32.gmra.mxu0 %v81
  %v109 = vpop.f32.mrf.mxu0
  %v110 = vadd.f32 0.0, %v109
  %111 = vdwg.mxu0
  %v112 = vmul.f32 %v101, 0.63661975
  %v113 = vmul.f32 %v104, 0.63661975
  %v114 = vmul.f32 %v107, 0.63661975
  %v115 = vmul.f32 %v110, 0.63661975
  %v116 = vadd.f32 %v112, 0.5
  %v117 = vadd.f32 %v113, 0.5
  %v118 = vadd.f32 %v114, 0.5
  %v119 = vadd.f32 %v115, 0.5
  %v120 = vfloor.f32 %v116
  %v121 = vfloor.f32 %v117
  %v122 = vfloor.f32 %v118
  %v123 = vfloor.f32 %v119
  %v124 = vsub.f32 %v112, %v120
  %v125 = vsub.f32 %v113, %v121
  %v126 = vsub.f32 %v114, %v122
  %v127 = vsub.f32 %v115, %v123
  %v128 = vmul.f32 %v124, 1.5707964
  %v129 = vmul.f32 %v125, 1.5707964
  %v130 = vmul.f32 %v126, 1.5707964
  %v131 = vmul.f32 %v127, 1.5707964
  %v132 = vmul.f32 %v128, %v128
  %v133 = vmul.f32 %v129, %v129
  %v134 = vmul.f32 %v130, %v130
  %v135 = vmul.f32 %v131, %v131
  %v136 = vmul.f32 %v132, -0.0001984127
  %v137 = vmul.f32 %v133, -0.0001984127
  %v138 = vmul.f32 %v134, -0.0001984127
  %v139 = vmul.f32 %v135, -0.0001984127
  %v140 = vadd.f32 %v136, 0.008333334
  %v141 = vadd.f32 %v137, 0.008333334
  %v142 = vadd.f32 %v138, 0.008333334
  %v143 = vadd.f32 %v139, 0.008333334
  %v144 = vmul.f32 %v132, %v140
  %v145 = vmul.f32 %v133, %v141
  %v146 = vmul.f32 %v134, %v142
  %v147 = vmul.f32 %v135, %v143
  %v148 = vadd.f32 %v144, -0.16666667
  %v149 = vadd.f32 %v145, -0.16666667
  %v150 = vadd.f32 %v146, -0.16666667
  %v151 = vadd.f32 %v147, -0.16666667
  %v152 = vmul.f32 %v132, %v148
  %v153 = vmul.f32 %v133, %v149
  %v154 = vmul.f32 %v134, %v150
  %v155 = vmul.f32 %v135, %v151
  %v156 = vadd.f32 %v152, 1.0
  %v157 = vadd.f32 %v153, 1.0
  %v158 = vadd.f32 %v154, 1.0
  %v159 = vadd.f32 %v155, 1.0
  %v160 = vmul.f32 %v128, %v156
  %v161 = vmul.f32 %v129, %v157
  %v162 = vmul.f32 %v130, %v158
  %v163 = vmul.f32 %v131, %v159
  %v164 = vmul.f32 %v132, 2.4801588e-05
  %v165 = vmul.f32 %v133, 2.4801588e-05
  %v166 = vmul.f32 %v134, 2.4801588e-05
  %v167 = vmul.f32 %v135, 2.4801588e-05
  %v168 = vadd.f32 %v164, -0.0013888889
  %v169 = vadd.f32 %v165, -0.0013888889
  %v170 = vadd.f32 %v166, -0.0013888889
  %v171 = vadd.f32 %v167, -0.0013888889
  %v172 = vmul.f32 %v132, %v168
  %v173 = vmul.f32 %v133, %v169
  %v174 = vmul.f32 %v134, %v170
  %v175 = vmul.f32 %v135, %v171
  %v176 = vadd.f32 %v172, 0.041666668
  %v177 = vadd.f32 %v173, 0.041666668
  %v178 = vadd.f32 %v174, 0.041666668
  %v179 = vadd.f32 %v175, 0.041666668
  %v180 = vmul.f32 %v132, %v176
  %v181 = vmul.f32 %v133, %v177
  %v182 = vmul.f32 %v134, %v178
  %v183 = vmul.f32 %v135, %v179
  %v184 = vadd.f32 %v180, -0.5
  %v185 = vadd.f32 %v181, -0.5
  %v186 = vadd.f32 %v182, -0.5
  %v187 = vadd.f32 %v183, -0.5
  %v188 = vmul.f32 %v132, %v184
  %v189 = vmul.f32 %v133, %v185
  %v190 = vmul.f32 %v134, %v186
  %v191 = vmul.f32 %v135, %v187
  %v192 = vadd.f32 %v188, 1.0
  %v193 = vadd.f32 %v189, 1.0
  %v194 = vadd.f32 %v190, 1.0
  %v195 = vadd.f32 %v191, 1.0
  %v196 = vmul.f32 %v120, 0.25
  %v197 = vmul.f32 %v121, 0.25
  %v198 = vmul.f32 %v122, 0.25
  %v199 = vmul.f32 %v123, 0.25
  %v200 = vfloor.f32 %v196
  %v201 = vfloor.f32 %v197
  %v202 = vfloor.f32 %v198
  %v203 = vfloor.f32 %v199
  %v204 = vmul.f32 %v200, 4.0
  %v205 = vmul.f32 %v201, 4.0
  %v206 = vmul.f32 %v202, 4.0
  %v207 = vmul.f32 %v203, 4.0
  %v208 = vsub.f32 %v120, %v204
  %v209 = vsub.f32 %v121, %v205
  %v210 = vsub.f32 %v122, %v206
  %v211 = vsub.f32 %v123, %v207
  %vm212 = vcmp.eq.f32.partialorder %v208, 1.0
  %vm213 = vcmp.eq.f32.partialorder %v209, 1.0
  %vm214 = vcmp.eq.f32.partialorder %v210, 1.0
  %vm215 = vcmp.eq.f32.partialorder %v211, 1.0
  %vm216 = vcmp.eq.f32.partialorder %v208, 3.0
  %vm217 = vcmp.eq.f32.partialorder %v209, 3.0
  %vm218 = vcmp.eq.f32.partialorder %v210, 3.0
  %vm219 = vcmp.eq.f32.partialorder %v211, 3.0
  %vm220 = vmor %vm212, %vm216
  %vm221 = vmor %vm213, %vm217
  %vm222 = vmor %vm214, %vm218
  %vm223 = vmor %vm215, %vm219
  %vm224 = vcmp.eq.f32.partialorder %v208, 2.0
  %vm225 = vcmp.eq.f32.partialorder %v209, 2.0
  %vm226 = vcmp.eq.f32.partialorder %v210, 2.0
  %vm227 = vcmp.eq.f32.partialorder %v211, 2.0
  %vm228 = vmor %vm224, %vm216
  %vm229 = vmor %vm225, %vm217
  %vm230 = vmor %vm226, %vm218
  %vm231 = vmor %vm227, %vm219
  %vm232 = vmor %vm212, %vm224
  %vm233 = vmor %vm213, %vm225
  %vm234 = vmor %vm214, %vm226
  %vm235 = vmor %vm215, %vm227
  %v236 = vsel %vm220, %v192, %v160
  %v237 = vsel %vm221, %v193, %v161
  %v238 = vsel %vm222, %v194, %v162
  %v239 = vsel %vm223, %v195, %v163
  %v240 = vsel %vm220, %v160, %v192
  %v241 = vsel %vm221, %v161, %v193
  %v242 = vsel %vm222, %v162, %v194
  %v243 = vsel %vm223, %v163, %v195
  %v244 = vsub.f32 0.0, %v236
  %v245 = vsub.f32 0.0, %v237
  %v246 = vsub.f32 0.0, %v238
  %v247 = vsub.f32 0.0, %v239
  %v248 = vsel %vm228, %v244, %v236
  %v249 = vsel %vm229, %v245, %v237
  %v250 = vsel %vm230, %v246, %v238
  %v251 = vsel %vm231, %v247, %v239
  %v252 = vsub.f32 0.0, %v240
  %v253 = vsub.f32 0.0, %v241
  %v254 = vsub.f32 0.0, %v242
  %v255 = vsub.f32 0.0, %v243
  %v256 = vsel %vm232, %v252, %v240
  %v257 = vsel %vm233, %v253, %v241
  %v258 = vsel %vm234, %v254, %v242
  %v259 = vsel %vm235, %v255, %v243
  %v260 = vlaneseq
  %v261 = vand.u32 %v260, 127
  %vm262 = vcmp.lt.s32.totalorder %v261, 3
  %vm263 = vcmp.lt.s32.totalorder %v261, 27
  %vm264 = vcmp.lt.s32.totalorder %v261, 51
  %v265 = vsel %vm264, %v256, 0.0
  %v266 = vsel %vm264, %v257, 0.0
  %v267 = vsel %vm264, %v258, 0.0
  %v268 = vsel %vm264, %v259, 0.0
  %v269 = vsel %vm263, %v248, %v265
  %v270 = vsel %vm263, %v249, %v266
  %v271 = vsel %vm263, %v250, %v267
  %v272 = vsel %vm263, %v251, %v268
  %v273 = vsel %vm262, %v101, %v269
  %v274 = vsel %vm262, %v104, %v270
  %v275 = vsel %vm262, %v107, %v271
  %v276 = vsel %vm262, %v110, %v272
  %v277 = vld [vmem:[%s1] sm:$0xff]
  %v278 = vld [vmem:[%s1 + $0x8] sm:$0xff]
  %v279 = vpack.c.bf16 %v274, %v273
  %v280 = vpack.c.bf16 %v276, %v275
  %v281 = vld [vmem:[%s4] sm:$0x1]
  %v282 = vperm.slane %v281, 0
  %v291 = vunpack.c.l.b16 %v21
  %v292 = vunpack.c.l.b16 %v22
  %v293 = vunpack.c.l.b16 %v23
  %v294 = vunpack.c.l.b16 %v24
  %v295 = vunpack.c.l.b16 %v25
  %v296 = vunpack.c.l.b16 %v26
  %v297 = vunpack.c.l.b16 %v27
  %v298 = vunpack.c.l.b16 %v28
  %v299 = vpack.c.b16 %v292, %v291
  %v300 = vpack.c.b16 %v294, %v293
  %v301 = vpack.c.b16 %v296, %v295
  %v302 = vpack.c.b16 %v298, %v297
  %vm307 = vcmask 523264
  %v309 = vsel %vm307, %v279, 0
  %v312 = vsel %vm307, %v280, 0
  %314 = vmatpush.bf16.msra.mxu0 0
  %315 = vmatpush.bf16.msra.mxu0 0
  %316 = vmatpush.bf16.msra.mxu0 0
  %317 = vmatpush.bf16.msra.mxu0 0
  %318 = vmatpush.bf16.msra.mxu0 %v302
  %319 = vmatpush.bf16.msra.mxu0 %v301
  %320 = vmatpush.bf16.msra.mxu0 %v300
  %321 = vmatpush.bf16.msra.mxu0 %v299
  %322 = vmatmul.bf16.gmra.mxu0 %v309
  %v323 = vpop.f32.mrf.mxu0
  %v324 = vadd.f32 %v282, %v323
  %v325 = vpop.f32.mrf.mxu0
  %v326 = vadd.f32 %v282, %v325
  %327 = vmatmul.bf16.gmra.mxu0 %v312
  %v328 = vpop.f32.mrf.mxu0
  %v329 = vadd.f32 %v282, %v328
  %v330 = vpop.f32.mrf.mxu0
  %v331 = vadd.f32 %v282, %v330
  %332 = vdwg.mxu0
  %v333 = vld [vmem:[%s4 + $0x8] sm:$0x1]
  %v334 = vld [vmem:[%s4 + $0x10] sm:$0x1]
  %vm335 = vcmask 261120
  %v336 = vsel %vm335, %v324, 0.0
  %337 = vadd.xlane.f32.xlu0 %v336
  %v338 = vpop.xlane.xlu0 %337
  %v339 = vsel %vm335, %v326, 0.0
  %340 = vadd.xlane.f32.xlu0 %v339
  %v341 = vpop.xlane.xlu0 %340
  %v342 = vsel %vm335, %v329, 0.0
  %343 = vadd.xlane.f32.xlu0 %v342
  %v344 = vpop.xlane.xlu0 %343
  %v345 = vsel %vm335, %v331, 0.0
  %346 = vadd.xlane.f32.xlu0 %v345
  %v347 = vpop.xlane.xlu0 %346
  %v348 = vrcp.pop 32.0
  %v349 = vmul.f32 32.0, %v348
  %v350 = vsub.f32 1.0, %v349
  %v351 = vmul.f32 %v348, %v350
  %v352 = vadd.f32 %v348, %v351
  %vm353 = vweird.f32 %v348
  %v354 = vsel %vm353, %v348, %v352
  %v355 = vmul.f32 %v338, %v354
  %v356 = vmul.f32 %v341, %v354
  %v357 = vmul.f32 %v344, %v354
  %v358 = vmul.f32 %v347, %v354
  %v359 = vsub.f32 %v324, %v355
  %v360 = vsub.f32 %v326, %v356
  %v361 = vsub.f32 %v329, %v357
  %v362 = vsub.f32 %v331, %v358
  %v363 = vmul.f32 %v359, %v359
  %v364 = vmul.f32 %v360, %v360
  %v365 = vmul.f32 %v361, %v361
  %v366 = vmul.f32 %v362, %v362
  %v367 = vsel %vm335, %v363, 0.0
  %368 = vadd.xlane.f32.xlu0 %v367
  %v369 = vpop.xlane.xlu0 %368
  %v370 = vsel %vm335, %v364, 0.0
  %371 = vadd.xlane.f32.xlu0 %v370
  %v372 = vpop.xlane.xlu0 %371
  %v373 = vsel %vm335, %v365, 0.0
  %374 = vadd.xlane.f32.xlu0 %v373
  %v375 = vpop.xlane.xlu0 %374
  %v376 = vsel %vm335, %v366, 0.0
  %377 = vadd.xlane.f32.xlu0 %v376
  %v378 = vpop.xlane.xlu0 %377
  %v379 = vmul.f32 %v369, %v354
  %v380 = vmul.f32 %v372, %v354
  %v381 = vmul.f32 %v375, %v354
  %v382 = vmul.f32 %v378, %v354
  %v383 = vadd.f32 %v379, 1e-05
  %v384 = vadd.f32 %v380, 1e-05
  %v385 = vadd.f32 %v381, 1e-05
  %v386 = vadd.f32 %v382, 1e-05
  %v387 = vrsqrt.pop %v383
  %v388 = vmul.f32 %v387, %v383
  %v389 = vmul.f32 %v388, %v387
  %v390 = vmul.f32 0.5, %v389
  %v391 = vsub.f32 1.5, %v390
  %v392 = vmul.f32 %v387, %v391
  %vm393 = vweird.f32 %v383
  %vm394 = vweird.f32 %v387
  %vm395 = vmor %vm393, %vm394
  %v396 = vsel %vm395, %v387, %v392
  %v397 = vrsqrt.pop %v384
  %v398 = vmul.f32 %v397, %v384
  %v399 = vmul.f32 %v398, %v397
  %v400 = vmul.f32 0.5, %v399
  %v401 = vsub.f32 1.5, %v400
  %v402 = vmul.f32 %v397, %v401
  %vm403 = vweird.f32 %v384
  %vm404 = vweird.f32 %v397
  %vm405 = vmor %vm403, %vm404
  %v406 = vsel %vm405, %v397, %v402
  %v407 = vrsqrt.pop %v385
  %v408 = vmul.f32 %v407, %v385
  %v409 = vmul.f32 %v408, %v407
  %v410 = vmul.f32 0.5, %v409
  %v411 = vsub.f32 1.5, %v410
  %v412 = vmul.f32 %v407, %v411
  %vm413 = vweird.f32 %v385
  %vm414 = vweird.f32 %v407
  %vm415 = vmor %vm413, %vm414
  %v416 = vsel %vm415, %v407, %v412
  %v417 = vrsqrt.pop %v386
  %v418 = vmul.f32 %v417, %v386
  %v419 = vmul.f32 %v418, %v417
  %v420 = vmul.f32 0.5, %v419
  %v421 = vsub.f32 1.5, %v420
  %v422 = vmul.f32 %v417, %v421
  %vm423 = vweird.f32 %v386
  %vm424 = vweird.f32 %v417
  %vm425 = vmor %vm423, %vm424
  %v426 = vsel %vm425, %v417, %v422
  %v427 = vmul.f32 %v359, %v396
  %v428 = vmul.f32 %v360, %v406
  %v429 = vmul.f32 %v361, %v416
  %v430 = vmul.f32 %v362, %v426
  %v431 = vperm.slane %v333, 0
  %v432 = vmul.f32 %v427, %v431
  %v433 = vmul.f32 %v428, %v431
  %v434 = vmul.f32 %v429, %v431
  %v435 = vmul.f32 %v430, %v431
  %v436 = vperm.slane %v334, 0
  %v437 = vadd.f32 %v432, %v436
  %v438 = vadd.f32 %v433, %v436
  %v439 = vadd.f32 %v434, %v436
  %v440 = vadd.f32 %v435, %v436
  %v441 = vld [vmem:[%s4 + $0x18] sm:$0x1]
  %v442 = vld [vmem:[%s4 + $0x20] sm:$0x1]
  %v443 = vsel %vm335, %v277, 0.0
  %444 = vadd.xlane.f32.xlu0 %v443
  %v445 = vpop.xlane.xlu0 %444
  %v446 = vsel %vm335, %v278, 0.0
  %447 = vadd.xlane.f32.xlu0 %v446
  %v448 = vpop.xlane.xlu0 %447
  %v449 = vmul.f32 %v445, %v354
  %v450 = vmul.f32 %v448, %v354
  %v451 = vsub.f32 %v277, %v449
  %v452 = vsub.f32 %v278, %v450
  %v453 = vmul.f32 %v451, %v451
  %v454 = vmul.f32 %v452, %v452
  %v455 = vsel %vm335, %v453, 0.0
  %456 = vadd.xlane.f32.xlu0 %v455
  %v457 = vpop.xlane.xlu0 %456
  %v458 = vsel %vm335, %v454, 0.0
  %459 = vadd.xlane.f32.xlu0 %v458
  %v460 = vpop.xlane.xlu0 %459
  %v461 = vmul.f32 %v457, %v354
  %v462 = vmul.f32 %v460, %v354
  %v463 = vadd.f32 %v461, 1e-05
  %v464 = vadd.f32 %v462, 1e-05
  %v465 = vrsqrt.pop %v463
  %v466 = vmul.f32 %v465, %v463
  %v467 = vmul.f32 %v466, %v465
  %v468 = vmul.f32 0.5, %v467
  %v469 = vsub.f32 1.5, %v468
  %v470 = vmul.f32 %v465, %v469
  %vm471 = vweird.f32 %v463
  %vm472 = vweird.f32 %v465
  %vm473 = vmor %vm471, %vm472
  %v474 = vsel %vm473, %v465, %v470
  %v475 = vrsqrt.pop %v464
  %v476 = vmul.f32 %v475, %v464
  %v477 = vmul.f32 %v476, %v475
  %v478 = vmul.f32 0.5, %v477
  %v479 = vsub.f32 1.5, %v478
  %v480 = vmul.f32 %v475, %v479
  %vm481 = vweird.f32 %v464
  %vm482 = vweird.f32 %v475
  %vm483 = vmor %vm481, %vm482
  %v484 = vsel %vm483, %v475, %v480
  %v485 = vmul.f32 %v451, %v474
  %v486 = vmul.f32 %v452, %v484
  %v487 = vperm.slane %v441, 0
  %v488 = vmul.f32 %v485, %v487
  %v489 = vmul.f32 %v486, %v487
  %v490 = vperm.slane %v442, 0
  %v491 = vadd.f32 %v488, %v490
  %v492 = vadd.f32 %v489, %v490
  %v493 = vpack.c.bf16 %v438, %v437
  %v494 = vpack.c.bf16 %v440, %v439
  %v495 = vld [vmem:[%s4 + $0x28] sm:$0x1]
  %v496 = vperm.slane %v495, 0
  %v501 = vunpack.c.l.b16 %v29
  %v502 = vunpack.c.l.b16 %v30
  %v503 = vunpack.c.l.b16 %v31
  %v504 = vunpack.c.l.b16 %v32
  %v505 = vpack.c.b16 %v502, %v501
  %v506 = vpack.c.b16 %v504, %v503
  %v510 = vsel %vm335, %v493, 0
  %v513 = vsel %vm335, %v494, 0
  %515 = vmatpush.bf16.msra.mxu0 0
  %516 = vmatpush.bf16.msra.mxu0 0
  %517 = vmatpush.bf16.msra.mxu0 0
  %518 = vmatpush.bf16.msra.mxu0 0
  %519 = vmatpush.bf16.msra.mxu0 0
  %520 = vmatpush.bf16.msra.mxu0 0
  %521 = vmatpush.bf16.msra.mxu0 %v506
  %522 = vmatpush.bf16.msra.mxu0 %v505
  %523 = vmatmul.bf16.gmra.mxu0 %v510
  %v524 = vpop.f32.mrf.mxu0
  %v525 = vadd.f32 %v496, %v524
  %v526 = vpop.f32.mrf.mxu0
  %v527 = vadd.f32 %v496, %v526
  %528 = vmatmul.bf16.gmra.mxu0 %v513
  %v529 = vpop.f32.mrf.mxu0
  %v530 = vadd.f32 %v496, %v529
  %v531 = vpop.f32.mrf.mxu0
  %v532 = vadd.f32 %v496, %v531
  %533 = vdwg.mxu0
  %v534 = vpack.c.bf16 %v492, %v491
  %v535 = vld [vmem:[%s4 + $0x30] sm:$0x1]
  %v536 = vperm.slane %v535, 0
  %v541 = vunpack.c.l.b16 %v57
  %v542 = vunpack.c.l.b16 %v58
  %v543 = vunpack.c.l.b16 %v59
  %v544 = vunpack.c.l.b16 %v60
  %v545 = vpack.c.b16 %v542, %v541
  %v546 = vpack.c.b16 %v544, %v543
  %v550 = vsel %vm335, %v534, 0
  %552 = vmatpush.bf16.msra.mxu0 0
  %553 = vmatpush.bf16.msra.mxu0 0
  %554 = vmatpush.bf16.msra.mxu0 0
  %555 = vmatpush.bf16.msra.mxu0 0
  %556 = vmatpush.bf16.msra.mxu0 0
  %557 = vmatpush.bf16.msra.mxu0 0
  %558 = vmatpush.bf16.msra.mxu0 %v546
  %559 = vmatpush.bf16.msra.mxu0 %v545
  %560 = vmatmul.bf16.gmra.mxu0 %v550
  %v561 = vpop.f32.mrf.mxu0
  %v562 = vadd.f32 %v536, %v561
  %v563 = vpop.f32.mrf.mxu0
  %v564 = vadd.f32 %v536, %v563
  %565 = vdwg.mxu0
  %v566 = vpack.c.bf16 %v525, %v525
  %v567 = vpack.c.bf16 %v527, %v527
  %v568 = vpack.c.bf16 %v530, %v530
  %v569 = vpack.c.bf16 %v532, %v532
  %v570 = vpack.c.bf16 %v562, %v562
  %v571 = vpack.c.bf16 %v564, %v564
  %v572 = vlaneseq
  %v573 = vshrl.u32 %v572, 7
  %v574 = vadd.s32 %v573, 8
  %v575 = vadd.s32 %v573, 16
  %v576 = vadd.s32 %v573, 24
  %vm577 = vcmp.ge.s32.totalorder %v573, 0
  %vm578 = vcmp.ge.s32.totalorder %v574, 0
  %vm579 = vcmp.ge.s32.totalorder %v575, 0
  %vm580 = vcmp.ge.s32.totalorder %v576, 0
  %vm581 = vcmp.lt.s32.totalorder %v573, 16
  %vm582 = vcmp.lt.s32.totalorder %v574, 16
  %vm583 = vcmp.lt.s32.totalorder %v575, 16
  %vm584 = vcmp.lt.s32.totalorder %v576, 16
  %vm585 = vmand %vm577, %vm581
  %vm586 = vmand %vm578, %vm582
  %vm587 = vmand %vm579, %vm583
  %vm588 = vmand %vm580, %vm584
  %vm589 = vcmp.ge.s32.totalorder %v261, 0
  %vm590 = vcmp.lt.s32.totalorder %v261, 8
  %vm591 = vmand %vm589, %vm590
  %vm592 = vmand %vm585, %vm591
  %vm593 = vmand %vm586, %vm591
  %vm594 = vmand %vm587, %vm591
  %vm595 = vmand %vm588, %vm591
  %vm596 = vcmp.ge.s32.totalorder %v573, 16
  %vm597 = vcmp.ge.s32.totalorder %v574, 16
  %vm598 = vcmp.ge.s32.totalorder %v575, 16
  %vm599 = vcmp.ge.s32.totalorder %v576, 16
  %vm600 = vcmp.lt.s32.totalorder %v573, 32
  %vm601 = vcmp.lt.s32.totalorder %v574, 32
  %vm602 = vcmp.lt.s32.totalorder %v575, 32
  %vm603 = vcmp.lt.s32.totalorder %v576, 32
  %vm604 = vmand %vm596, %vm600
  %vm605 = vmand %vm597, %vm601
  %vm606 = vmand %vm598, %vm602
  %vm607 = vmand %vm599, %vm603
  %vm608 = vcmp.ge.s32.totalorder %v261, 8
  %vm609 = vcmp.lt.s32.totalorder %v261, 16
  %vm610 = vmand %vm608, %vm609
  %vm611 = vmand %vm604, %vm610
  %vm612 = vmand %vm605, %vm610
  %vm613 = vmand %vm606, %vm610
  %vm614 = vmand %vm607, %vm610
  %vm615 = vmor %vm592, %vm611
  %vm616 = vmor %vm593, %vm612
  %vm617 = vmor %vm594, %vm613
  %vm618 = vmor %vm595, %vm614
  %v619 = vsel %vm615, 0.0, -1e+30
  %v620 = vsel %vm616, 0.0, -1e+30
  %v621 = vsel %vm617, 0.0, -1e+30
  %v622 = vsel %vm618, 0.0, -1e+30
  %v627 = vunpack.c.l.b16 %v566
  %v628 = vunpack.c.l.b16 %v567
  %v629 = vunpack.c.l.b16 %v568
  %v630 = vunpack.c.l.b16 %v569
  %v631 = vpack.c.b16 %v628, %v627
  %v632 = vpack.c.b16 %v630, %v629
  %v635 = vunpack.c.l.b16 %v570
  %v636 = vunpack.c.l.b16 %v571
  %v637 = vpack.c.b16 %v636, %v635
  %v639 = vsel %vm70, %v631, 0
  %v642 = vsel %vm70, %v632, 0
  %v645 = vsel %vm70, %v637, 0
  %647 = vmatpush.bf16.xpose.msra.mxu0 0
  %648 = vmatpush.bf16.xpose.msra.mxu0 0
  %649 = vmatpush.bf16.xpose.msra.mxu0 0
  %650 = vmatpush.bf16.xpose.msra.mxu0 0
  %651 = vmatpush.bf16.xpose.msra.mxu0 0
  %652 = vmatpush.bf16.xpose.msra.mxu0 0
  %653 = vmatpush.bf16.xpose.msra.mxu0 0
  %654 = vmatpush.bf16.xpose.msra.mxu0 %v645
  %655 = vmatmul.bf16.gmra.mxu0 %v639
  %v656 = vpop.f32.mrf.mxu0
  %v657 = vadd.f32 %v619, %v656
  %v658 = vpop.f32.mrf.mxu0
  %v659 = vadd.f32 %v620, %v658
  %660 = vmatmul.bf16.gmra.mxu0 %v642
  %v661 = vpop.f32.mrf.mxu0
  %v662 = vadd.f32 %v621, %v661
  %v663 = vpop.f32.mrf.mxu0
  %v664 = vadd.f32 %v622, %v663
  %665 = vdwg.mxu0
  %vm666 = vcmask 130048
  %v667 = vsel %vm666, %v657, -inf
  %668 = vmax.xlane.f32.xlu0 %v667
  %v669 = vpop.xlane.xlu0 %668
  %v670 = vsel %vm666, %v659, -inf
  %671 = vmax.xlane.f32.xlu0 %v670
  %v672 = vpop.xlane.xlu0 %671
  %v673 = vsel %vm666, %v662, -inf
  %674 = vmax.xlane.f32.xlu0 %v673
  %v675 = vpop.xlane.xlu0 %674
  %v676 = vsel %vm666, %v664, -inf
  %677 = vmax.xlane.f32.xlu0 %v676
  %v678 = vpop.xlane.xlu0 %677
  %v679 = vsub.f32 %v657, %v669
  %v680 = vsub.f32 %v659, %v672
  %v681 = vsub.f32 %v662, %v675
  %v682 = vsub.f32 %v664, %v678
  %v683 = vmul.f32 %v679, 1.442695
  %v684 = vpow.pop %v683
  %v685 = vmul.f32 %v680, 1.442695
  %v686 = vpow.pop %v685
  %v687 = vmul.f32 %v681, 1.442695
  %v688 = vpow.pop %v687
  %v689 = vmul.f32 %v682, 1.442695
  %v690 = vpow.pop %v689
  %v691 = vsel %vm666, %v684, 0.0
  %692 = vadd.xlane.f32.xlu0 %v691
  %v693 = vpop.xlane.xlu0 %692
  %v694 = vsel %vm666, %v686, 0.0
  %695 = vadd.xlane.f32.xlu0 %v694
  %v696 = vpop.xlane.xlu0 %695
  %v697 = vsel %vm666, %v688, 0.0
  %698 = vadd.xlane.f32.xlu0 %v697
  %v699 = vpop.xlane.xlu0 %698
  %v700 = vsel %vm666, %v690, 0.0
  %701 = vadd.xlane.f32.xlu0 %v700
  %v702 = vpop.xlane.xlu0 %701
  %v703 = vrcp.pop %v693
  %v704 = vrcp.pop %v696
  %v705 = vrcp.pop %v699
  %v706 = vrcp.pop %v702
  %v707 = vmul.f32 %v684, %v703
  %v708 = vmul.f32 %v686, %v704
  %v709 = vmul.f32 %v688, %v705
  %v710 = vmul.f32 %v690, %v706
  %v711 = vpack.c.bf16 %v708, %v707
  %v712 = vpack.c.bf16 %v710, %v709
  %713 = vrot.lane.b32.xlu0 %v637, 120
  %v714 = vpop.permute.xlu0 %713
  %v717 = vsel %vm666, %v711, 0
  %v720 = vsel %vm666, %v712, 0
  %722 = vmatpush.bf16.msra.mxu0 0
  %723 = vmatpush.bf16.msra.mxu0 0
  %724 = vmatpush.bf16.msra.mxu0 0
  %725 = vmatpush.bf16.msra.mxu0 0
  %726 = vmatpush.bf16.msra.mxu0 0
  %727 = vmatpush.bf16.msra.mxu0 0
  %728 = vmatpush.bf16.msra.mxu0 0
  %729 = vmatpush.bf16.msra.mxu0 %v714
  %730 = vmatmul.bf16.gmra.mxu0 %v717
  %v731 = vpop.f32.mrf.mxu0
  %v732 = vadd.f32 0.0, %v731
  %v733 = vpop.f32.mrf.mxu0
  %v734 = vadd.f32 0.0, %v733
  %735 = vmatmul.bf16.gmra.mxu0 %v720
  %v736 = vpop.f32.mrf.mxu0
  %v737 = vadd.f32 0.0, %v736
  %v738 = vpop.f32.mrf.mxu0
  %v739 = vadd.f32 0.0, %v738
  %740 = vdwg.mxu0
  %v741 = vpack.c.bf16 %v734, %v732
  %v742 = vpack.c.bf16 %v739, %v737
  %743 = vrot.lane.b32.xlu0 %v631, 120
  %v744 = vpop.permute.xlu0 %743
  %745 = vrot.lane.b32.xlu0 %v632, 120
  %v746 = vpop.permute.xlu0 %745
  %747 = vrot.lane.b32.xlu0 %v637, 112
  %v748 = vpop.permute.xlu0 %747
  %v750 = vsel %vm70, %v744, 0
  %v753 = vsel %vm70, %v746, 0
  %v756 = vsel %vm70, %v748, 0
  %758 = vmatpush.bf16.xpose.msra.mxu0 0
  %759 = vmatpush.bf16.xpose.msra.mxu0 0
  %760 = vmatpush.bf16.xpose.msra.mxu0 0
  %761 = vmatpush.bf16.xpose.msra.mxu0 0
  %762 = vmatpush.bf16.xpose.msra.mxu0 0
  %763 = vmatpush.bf16.xpose.msra.mxu0 0
  %764 = vmatpush.bf16.xpose.msra.mxu0 0
  %765 = vmatpush.bf16.xpose.msra.mxu0 %v756
  %766 = vmatmul.bf16.gmra.mxu0 %v750
  %v767 = vpop.f32.mrf.mxu0
  %v768 = vadd.f32 %v619, %v767
  %v769 = vpop.f32.mrf.mxu0
  %v770 = vadd.f32 %v620, %v769
  %771 = vmatmul.bf16.gmra.mxu0 %v753
  %v772 = vpop.f32.mrf.mxu0
  %v773 = vadd.f32 %v621, %v772
  %v774 = vpop.f32.mrf.mxu0
  %v775 = vadd.f32 %v622, %v774
  %776 = vdwg.mxu0
  %v777 = vsel %vm666, %v768, -inf
  %778 = vmax.xlane.f32.xlu0 %v777
  %v779 = vpop.xlane.xlu0 %778
  %v780 = vsel %vm666, %v770, -inf
  %781 = vmax.xlane.f32.xlu0 %v780
  %v782 = vpop.xlane.xlu0 %781
  %v783 = vsel %vm666, %v773, -inf
  %784 = vmax.xlane.f32.xlu0 %v783
  %v785 = vpop.xlane.xlu0 %784
  %v786 = vsel %vm666, %v775, -inf
  %787 = vmax.xlane.f32.xlu0 %v786
  %v788 = vpop.xlane.xlu0 %787
  %v789 = vsub.f32 %v768, %v779
  %v790 = vsub.f32 %v770, %v782
  %v791 = vsub.f32 %v773, %v785
  %v792 = vsub.f32 %v775, %v788
  %v793 = vmul.f32 %v789, 1.442695
  %v794 = vpow.pop %v793
  %v795 = vmul.f32 %v790, 1.442695
  %v796 = vpow.pop %v795
  %v797 = vmul.f32 %v791, 1.442695
  %v798 = vpow.pop %v797
  %v799 = vmul.f32 %v792, 1.442695
  %v800 = vpow.pop %v799
  %v801 = vsel %vm666, %v794, 0.0
  %802 = vadd.xlane.f32.xlu0 %v801
  %v803 = vpop.xlane.xlu0 %802
  %v804 = vsel %vm666, %v796, 0.0
  %805 = vadd.xlane.f32.xlu0 %v804
  %v806 = vpop.xlane.xlu0 %805
  %v807 = vsel %vm666, %v798, 0.0
  %808 = vadd.xlane.f32.xlu0 %v807
  %v809 = vpop.xlane.xlu0 %808
  %v810 = vsel %vm666, %v800, 0.0
  %811 = vadd.xlane.f32.xlu0 %v810
  %v812 = vpop.xlane.xlu0 %811
  %v813 = vrcp.pop %v803
  %v814 = vrcp.pop %v806
  %v815 = vrcp.pop %v809
  %v816 = vrcp.pop %v812
  %v817 = vmul.f32 %v794, %v813
  %v818 = vmul.f32 %v796, %v814
  %v819 = vmul.f32 %v798, %v815
  %v820 = vmul.f32 %v800, %v816
  %v821 = vpack.c.bf16 %v818, %v817
  %v822 = vpack.c.bf16 %v820, %v819
  %823 = vrot.lane.b32.xlu0 %v637, 104
  %v824 = vpop.permute.xlu0 %823
  %v827 = vsel %vm666, %v821, 0
  %v830 = vsel %vm666, %v822, 0
  %832 = vmatpush.bf16.msra.mxu0 0
  %833 = vmatpush.bf16.msra.mxu0 0
  %834 = vmatpush.bf16.msra.mxu0 0
  %835 = vmatpush.bf16.msra.mxu0 0
  %836 = vmatpush.bf16.msra.mxu0 0
  %837 = vmatpush.bf16.msra.mxu0 0
  %838 = vmatpush.bf16.msra.mxu0 0
  %839 = vmatpush.bf16.msra.mxu0 %v824
  %840 = vmatmul.bf16.gmra.mxu0 %v827
  %v841 = vpop.f32.mrf.mxu0
  %v842 = vadd.f32 0.0, %v841
  %v843 = vpop.f32.mrf.mxu0
  %v844 = vadd.f32 0.0, %v843
  %845 = vmatmul.bf16.gmra.mxu0 %v830
  %v846 = vpop.f32.mrf.mxu0
  %v847 = vadd.f32 0.0, %v846
  %v848 = vpop.f32.mrf.mxu0
  %v849 = vadd.f32 0.0, %v848
  %850 = vdwg.mxu0
  %v851 = vpack.c.bf16 %v844, %v842
  %v852 = vpack.c.bf16 %v849, %v847
  %v854 = vsel %vm70, %v851, 0
  %v857 = vsel %vm70, %v852, 0
  %vm859 = vcmask 1043456
  %v861 = vsel %vm859, %v34, 0
  %863 = vmatpush.bf16.msra.mxu0 0
  %864 = vmatpush.bf16.msra.mxu0 0
  %865 = vmatpush.bf16.msra.mxu0 0
  %866 = vmatpush.bf16.msra.mxu0 0
  %867 = vmatpush.bf16.msra.mxu0 0
  %868 = vmatpush.bf16.msra.mxu0 0
  %869 = vmatpush.bf16.msra.mxu0 0
  %870 = vmatpush.bf16.msra.mxu0 %v861
  %871 = vmatmul.bf16.gmra.mxu0 %v854
  %v872 = vpop.f32.mrf.mxu0
  %v873 = vadd.f32 0.0, %v872
  %v874 = vpop.f32.mrf.mxu0
  %v875 = vadd.f32 0.0, %v874
  %876 = vmatmul.bf16.gmra.mxu0 %v857
  %v877 = vpop.f32.mrf.mxu0
  %v878 = vadd.f32 0.0, %v877
  %v879 = vpop.f32.mrf.mxu0
  %v880 = vadd.f32 0.0, %v879
  %881 = vdwg.mxu0
  %v883 = vsel %vm70, %v741, 0
  %v886 = vsel %vm70, %v742, 0
  %v889 = vsel %vm859, %v33, 0
  %891 = vmatpush.bf16.msra.mxu0 0
  %892 = vmatpush.bf16.msra.mxu0 0
  %893 = vmatpush.bf16.msra.mxu0 0
  %894 = vmatpush.bf16.msra.mxu0 0
  %895 = vmatpush.bf16.msra.mxu0 0
  %896 = vmatpush.bf16.msra.mxu0 0
  %897 = vmatpush.bf16.msra.mxu0 0
  %898 = vmatpush.bf16.msra.mxu0 %v889
  %899 = vmatmul.bf16.gmra.mxu0 %v883
  %v900 = vpop.f32.mrf.mxu0
  %v901 = vadd.f32 %v873, %v900
  %v902 = vpop.f32.mrf.mxu0
  %v903 = vadd.f32 %v875, %v902
  %904 = vmatmul.bf16.gmra.mxu0 %v886
  %v905 = vpop.f32.mrf.mxu0
  %v906 = vadd.f32 %v878, %v905
  %v907 = vpop.f32.mrf.mxu0
  %v908 = vadd.f32 %v880, %v907
  %909 = vdwg.mxu0
  %910 = vrot.lane.b32.xlu0 %v631, 112
  %v911 = vpop.permute.xlu0 %910
  %912 = vrot.lane.b32.xlu0 %v632, 112
  %v913 = vpop.permute.xlu0 %912
  %914 = vrot.lane.b32.xlu0 %v637, 96
  %v915 = vpop.permute.xlu0 %914
  %v917 = vsel %vm70, %v911, 0
  %v920 = vsel %vm70, %v913, 0
  %v923 = vsel %vm70, %v915, 0
  %925 = vmatpush.bf16.xpose.msra.mxu0 0
  %926 = vmatpush.bf16.xpose.msra.mxu0 0
  %927 = vmatpush.bf16.xpose.msra.mxu0 0
  %928 = vmatpush.bf16.xpose.msra.mxu0 0
  %929 = vmatpush.bf16.xpose.msra.mxu0 0
  %930 = vmatpush.bf16.xpose.msra.mxu0 0
  %931 = vmatpush.bf16.xpose.msra.mxu0 0
  %932 = vmatpush.bf16.xpose.msra.mxu0 %v923
  %933 = vmatmul.bf16.gmra.mxu0 %v917
  %v934 = vpop.f32.mrf.mxu0
  %v935 = vadd.f32 %v619, %v934
  %v936 = vpop.f32.mrf.mxu0
  %v937 = vadd.f32 %v620, %v936
  %938 = vmatmul.bf16.gmra.mxu0 %v920
  %v939 = vpop.f32.mrf.mxu0
  %v940 = vadd.f32 %v621, %v939
  %v941 = vpop.f32.mrf.mxu0
  %v942 = vadd.f32 %v622, %v941
  %943 = vdwg.mxu0
  %v944 = vsel %vm666, %v935, -inf
  %945 = vmax.xlane.f32.xlu0 %v944
  %v946 = vpop.xlane.xlu0 %945
  %v947 = vsel %vm666, %v937, -inf
  %948 = vmax.xlane.f32.xlu0 %v947
  %v949 = vpop.xlane.xlu0 %948
  %v950 = vsel %vm666, %v940, -inf
  %951 = vmax.xlane.f32.xlu0 %v950
  %v952 = vpop.xlane.xlu0 %951
  %v953 = vsel %vm666, %v942, -inf
  %954 = vmax.xlane.f32.xlu0 %v953
  %v955 = vpop.xlane.xlu0 %954
  %v956 = vsub.f32 %v935, %v946
  %v957 = vsub.f32 %v937, %v949
  %v958 = vsub.f32 %v940, %v952
  %v959 = vsub.f32 %v942, %v955
  %v960 = vmul.f32 %v956, 1.442695
  %v961 = vpow.pop %v960
  %v962 = vmul.f32 %v957, 1.442695
  %v963 = vpow.pop %v962
  %v964 = vmul.f32 %v958, 1.442695
  %v965 = vpow.pop %v964
  %v966 = vmul.f32 %v959, 1.442695
  %v967 = vpow.pop %v966
  %v968 = vsel %vm666, %v961, 0.0
  %969 = vadd.xlane.f32.xlu0 %v968
  %v970 = vpop.xlane.xlu0 %969
  %v971 = vsel %vm666, %v963, 0.0
  %972 = vadd.xlane.f32.xlu0 %v971
  %v973 = vpop.xlane.xlu0 %972
  %v974 = vsel %vm666, %v965, 0.0
  %975 = vadd.xlane.f32.xlu0 %v974
  %v976 = vpop.xlane.xlu0 %975
  %v977 = vsel %vm666, %v967, 0.0
  %978 = vadd.xlane.f32.xlu0 %v977
  %v979 = vpop.xlane.xlu0 %978
  %v980 = vrcp.pop %v970
  %v981 = vrcp.pop %v973
  %v982 = vrcp.pop %v976
  %v983 = vrcp.pop %v979
  %v984 = vmul.f32 %v961, %v980
  %v985 = vmul.f32 %v963, %v981
  %v986 = vmul.f32 %v965, %v982
  %v987 = vmul.f32 %v967, %v983
  %v988 = vpack.c.bf16 %v985, %v984
  %v989 = vpack.c.bf16 %v987, %v986
  %990 = vrot.lane.b32.xlu0 %v637, 88
  %v991 = vpop.permute.xlu0 %990
  %v994 = vsel %vm666, %v988, 0
  %v997 = vsel %vm666, %v989, 0
  %999 = vmatpush.bf16.msra.mxu0 0
  %1000 = vmatpush.bf16.msra.mxu0 0
  %1001 = vmatpush.bf16.msra.mxu0 0
  %1002 = vmatpush.bf16.msra.mxu0 0
  %1003 = vmatpush.bf16.msra.mxu0 0
  %1004 = vmatpush.bf16.msra.mxu0 0
  %1005 = vmatpush.bf16.msra.mxu0 0
  %1006 = vmatpush.bf16.msra.mxu0 %v991
  %1007 = vmatmul.bf16.gmra.mxu0 %v994
  %v1008 = vpop.f32.mrf.mxu0
  %v1009 = vadd.f32 0.0, %v1008
  %v1010 = vpop.f32.mrf.mxu0
  %v1011 = vadd.f32 0.0, %v1010
  %1012 = vmatmul.bf16.gmra.mxu0 %v997
  %v1013 = vpop.f32.mrf.mxu0
  %v1014 = vadd.f32 0.0, %v1013
  %v1015 = vpop.f32.mrf.mxu0
  %v1016 = vadd.f32 0.0, %v1015
  %1017 = vdwg.mxu0
  %v1018 = vpack.c.bf16 %v1011, %v1009
  %v1019 = vpack.c.bf16 %v1016, %v1014
  %v1021 = vsel %vm70, %v1018, 0
  %v1024 = vsel %vm70, %v1019, 0
  %v1027 = vsel %vm859, %v35, 0
  %1029 = vmatpush.bf16.msra.mxu0 0
  %1030 = vmatpush.bf16.msra.mxu0 0
  %1031 = vmatpush.bf16.msra.mxu0 0
  %1032 = vmatpush.bf16.msra.mxu0 0
  %1033 = vmatpush.bf16.msra.mxu0 0
  %1034 = vmatpush.bf16.msra.mxu0 0
  %1035 = vmatpush.bf16.msra.mxu0 0
  %1036 = vmatpush.bf16.msra.mxu0 %v1027
  %1037 = vmatmul.bf16.gmra.mxu0 %v1021
  %v1038 = vpop.f32.mrf.mxu0
  %v1039 = vadd.f32 0.0, %v1038
  %v1040 = vpop.f32.mrf.mxu0
  %v1041 = vadd.f32 0.0, %v1040
  %1042 = vmatmul.bf16.gmra.mxu0 %v1024
  %v1043 = vpop.f32.mrf.mxu0
  %v1044 = vadd.f32 0.0, %v1043
  %v1045 = vpop.f32.mrf.mxu0
  %v1046 = vadd.f32 0.0, %v1045
  %1047 = vdwg.mxu0
  %v1048 = vadd.f32 %v901, %v1039
  %v1049 = vadd.f32 %v903, %v1041
  %v1050 = vadd.f32 %v906, %v1044
  %v1051 = vadd.f32 %v908, %v1046
  %1052 = vrot.lane.b32.xlu0 %v631, 104
  %v1053 = vpop.permute.xlu0 %1052
  %1054 = vrot.lane.b32.xlu0 %v632, 104
  %v1055 = vpop.permute.xlu0 %1054
  %1056 = vrot.lane.b32.xlu0 %v637, 80
  %v1057 = vpop.permute.xlu0 %1056
  %v1059 = vsel %vm70, %v1053, 0
  %v1062 = vsel %vm70, %v1055, 0
  %v1065 = vsel %vm70, %v1057, 0
  %1067 = vmatpush.bf16.xpose.msra.mxu0 0
  %1068 = vmatpush.bf16.xpose.msra.mxu0 0
  %1069 = vmatpush.bf16.xpose.msra.mxu0 0
  %1070 = vmatpush.bf16.xpose.msra.mxu0 0
  %1071 = vmatpush.bf16.xpose.msra.mxu0 0
  %1072 = vmatpush.bf16.xpose.msra.mxu0 0
  %1073 = vmatpush.bf16.xpose.msra.mxu0 0
  %1074 = vmatpush.bf16.xpose.msra.mxu0 %v1065
  %1075 = vmatmul.bf16.gmra.mxu0 %v1059
  %v1076 = vpop.f32.mrf.mxu0
  %v1077 = vadd.f32 %v619, %v1076
  %v1078 = vpop.f32.mrf.mxu0
  %v1079 = vadd.f32 %v620, %v1078
  %1080 = vmatmul.bf16.gmra.mxu0 %v1062
  %v1081 = vpop.f32.mrf.mxu0
  %v1082 = vadd.f32 %v621, %v1081
  %v1083 = vpop.f32.mrf.mxu0
  %v1084 = vadd.f32 %v622, %v1083
  %1085 = vdwg.mxu0
  %v1086 = vsel %vm666, %v1077, -inf
  %1087 = vmax.xlane.f32.xlu0 %v1086
  %v1088 = vpop.xlane.xlu0 %1087
  %v1089 = vsel %vm666, %v1079, -inf
  %1090 = vmax.xlane.f32.xlu0 %v1089
  %v1091 = vpop.xlane.xlu0 %1090
  %v1092 = vsel %vm666, %v1082, -inf
  %1093 = vmax.xlane.f32.xlu0 %v1092
  %v1094 = vpop.xlane.xlu0 %1093
  %v1095 = vsel %vm666, %v1084, -inf
  %1096 = vmax.xlane.f32.xlu0 %v1095
  %v1097 = vpop.xlane.xlu0 %1096
  %v1098 = vsub.f32 %v1077, %v1088
  %v1099 = vsub.f32 %v1079, %v1091
  %v1100 = vsub.f32 %v1082, %v1094
  %v1101 = vsub.f32 %v1084, %v1097
  %v1102 = vmul.f32 %v1098, 1.442695
  %v1103 = vpow.pop %v1102
  %v1104 = vmul.f32 %v1099, 1.442695
  %v1105 = vpow.pop %v1104
  %v1106 = vmul.f32 %v1100, 1.442695
  %v1107 = vpow.pop %v1106
  %v1108 = vmul.f32 %v1101, 1.442695
  %v1109 = vpow.pop %v1108
  %v1110 = vsel %vm666, %v1103, 0.0
  %1111 = vadd.xlane.f32.xlu0 %v1110
  %v1112 = vpop.xlane.xlu0 %1111
  %v1113 = vsel %vm666, %v1105, 0.0
  %1114 = vadd.xlane.f32.xlu0 %v1113
  %v1115 = vpop.xlane.xlu0 %1114
  %v1116 = vsel %vm666, %v1107, 0.0
  %1117 = vadd.xlane.f32.xlu0 %v1116
  %v1118 = vpop.xlane.xlu0 %1117
  %v1119 = vsel %vm666, %v1109, 0.0
  %1120 = vadd.xlane.f32.xlu0 %v1119
  %v1121 = vpop.xlane.xlu0 %1120
  %v1122 = vrcp.pop %v1112
  %v1123 = vrcp.pop %v1115
  %v1124 = vrcp.pop %v1118
  %v1125 = vrcp.pop %v1121
  %v1126 = vmul.f32 %v1103, %v1122
  %v1127 = vmul.f32 %v1105, %v1123
  %v1128 = vmul.f32 %v1107, %v1124
  %v1129 = vmul.f32 %v1109, %v1125
  %v1130 = vpack.c.bf16 %v1127, %v1126
  %v1131 = vpack.c.bf16 %v1129, %v1128
  %1132 = vrot.lane.b32.xlu0 %v637, 72
  %v1133 = vpop.permute.xlu0 %1132
  %v1136 = vsel %vm666, %v1130, 0
  %v1139 = vsel %vm666, %v1131, 0
  %1141 = vmatpush.bf16.msra.mxu0 0
  %1142 = vmatpush.bf16.msra.mxu0 0
  %1143 = vmatpush.bf16.msra.mxu0 0
  %1144 = vmatpush.bf16.msra.mxu0 0
  %1145 = vmatpush.bf16.msra.mxu0 0
  %1146 = vmatpush.bf16.msra.mxu0 0
  %1147 = vmatpush.bf16.msra.mxu0 0
  %1148 = vmatpush.bf16.msra.mxu0 %v1133
  %1149 = vmatmul.bf16.gmra.mxu0 %v1136
  %v1150 = vpop.f32.mrf.mxu0
  %v1151 = vadd.f32 0.0, %v1150
  %v1152 = vpop.f32.mrf.mxu0
  %v1153 = vadd.f32 0.0, %v1152
  %1154 = vmatmul.bf16.gmra.mxu0 %v1139
  %v1155 = vpop.f32.mrf.mxu0
  %v1156 = vadd.f32 0.0, %v1155
  %v1157 = vpop.f32.mrf.mxu0
  %v1158 = vadd.f32 0.0, %v1157
  %1159 = vdwg.mxu0
  %v1160 = vpack.c.bf16 %v1153, %v1151
  %v1161 = vpack.c.bf16 %v1158, %v1156
  %v1163 = vsel %vm70, %v1160, 0
  %v1166 = vsel %vm70, %v1161, 0
  %v1169 = vsel %vm859, %v36, 0
  %1171 = vmatpush.bf16.msra.mxu0 0
  %1172 = vmatpush.bf16.msra.mxu0 0
  %1173 = vmatpush.bf16.msra.mxu0 0
  %1174 = vmatpush.bf16.msra.mxu0 0
  %1175 = vmatpush.bf16.msra.mxu0 0
  %1176 = vmatpush.bf16.msra.mxu0 0
  %1177 = vmatpush.bf16.msra.mxu0 0
  %1178 = vmatpush.bf16.msra.mxu0 %v1169
  %1179 = vmatmul.bf16.gmra.mxu0 %v1163
  %v1180 = vpop.f32.mrf.mxu0
  %v1181 = vadd.f32 0.0, %v1180
  %v1182 = vpop.f32.mrf.mxu0
  %v1183 = vadd.f32 0.0, %v1182
  %1184 = vmatmul.bf16.gmra.mxu0 %v1166
  %v1185 = vpop.f32.mrf.mxu0
  %v1186 = vadd.f32 0.0, %v1185
  %v1187 = vpop.f32.mrf.mxu0
  %v1188 = vadd.f32 0.0, %v1187
  %1189 = vdwg.mxu0
  %v1190 = vadd.f32 %v1048, %v1181
  %v1191 = vadd.f32 %v1049, %v1183
  %v1192 = vadd.f32 %v1050, %v1186
  %v1193 = vadd.f32 %v1051, %v1188
  %v1194 = vadd.f32 %v324, %v1190
  %v1195 = vadd.f32 %v326, %v1191
  %v1196 = vadd.f32 %v329, %v1192
  %v1197 = vadd.f32 %v331, %v1193
  %v1198 = vld [vmem:[%s4 + $0x38] sm:$0x1]
  %v1199 = vperm.slane %v1198, 0
  %v1200 = vadd.f32 %v1194, %v1199
  %v1201 = vadd.f32 %v1195, %v1199
  %v1202 = vadd.f32 %v1196, %v1199
  %v1203 = vadd.f32 %v1197, %v1199
  %v1204 = vld [vmem:[%s4 + $0x40] sm:$0x1]
  %v1205 = vld [vmem:[%s4 + $0x48] sm:$0x1]
  %v1206 = vsel %vm335, %v1200, 0.0
  %1207 = vadd.xlane.f32.xlu0 %v1206
  %v1208 = vpop.xlane.xlu0 %1207
  %v1209 = vsel %vm335, %v1201, 0.0
  %1210 = vadd.xlane.f32.xlu0 %v1209
  %v1211 = vpop.xlane.xlu0 %1210
  %v1212 = vsel %vm335, %v1202, 0.0
  %1213 = vadd.xlane.f32.xlu0 %v1212
  %v1214 = vpop.xlane.xlu0 %1213
  %v1215 = vsel %vm335, %v1203, 0.0
  %1216 = vadd.xlane.f32.xlu0 %v1215
  %v1217 = vpop.xlane.xlu0 %1216
  %v1218 = vmul.f32 %v1208, %v354
  %v1219 = vmul.f32 %v1211, %v354
  %v1220 = vmul.f32 %v1214, %v354
  %v1221 = vmul.f32 %v1217, %v354
  %v1222 = vsub.f32 %v1200, %v1218
  %v1223 = vsub.f32 %v1201, %v1219
  %v1224 = vsub.f32 %v1202, %v1220
  %v1225 = vsub.f32 %v1203, %v1221
  %v1226 = vmul.f32 %v1222, %v1222
  %v1227 = vmul.f32 %v1223, %v1223
  %v1228 = vmul.f32 %v1224, %v1224
  %v1229 = vmul.f32 %v1225, %v1225
  %v1230 = vsel %vm335, %v1226, 0.0
  %1231 = vadd.xlane.f32.xlu0 %v1230
  %v1232 = vpop.xlane.xlu0 %1231
  %v1233 = vsel %vm335, %v1227, 0.0
  %1234 = vadd.xlane.f32.xlu0 %v1233
  %v1235 = vpop.xlane.xlu0 %1234
  %v1236 = vsel %vm335, %v1228, 0.0
  %1237 = vadd.xlane.f32.xlu0 %v1236
  %v1238 = vpop.xlane.xlu0 %1237
  %v1239 = vsel %vm335, %v1229, 0.0
  %1240 = vadd.xlane.f32.xlu0 %v1239
  %v1241 = vpop.xlane.xlu0 %1240
  %v1242 = vmul.f32 %v1232, %v354
  %v1243 = vmul.f32 %v1235, %v354
  %v1244 = vmul.f32 %v1238, %v354
  %v1245 = vmul.f32 %v1241, %v354
  %v1246 = vadd.f32 %v1242, 1e-05
  %v1247 = vadd.f32 %v1243, 1e-05
  %v1248 = vadd.f32 %v1244, 1e-05
  %v1249 = vadd.f32 %v1245, 1e-05
  %v1250 = vrsqrt.pop %v1246
  %v1251 = vmul.f32 %v1250, %v1246
  %v1252 = vmul.f32 %v1251, %v1250
  %v1253 = vmul.f32 0.5, %v1252
  %v1254 = vsub.f32 1.5, %v1253
  %v1255 = vmul.f32 %v1250, %v1254
  %vm1256 = vweird.f32 %v1246
  %vm1257 = vweird.f32 %v1250
  %vm1258 = vmor %vm1256, %vm1257
  %v1259 = vsel %vm1258, %v1250, %v1255
  %v1260 = vrsqrt.pop %v1247
  %v1261 = vmul.f32 %v1260, %v1247
  %v1262 = vmul.f32 %v1261, %v1260
  %v1263 = vmul.f32 0.5, %v1262
  %v1264 = vsub.f32 1.5, %v1263
  %v1265 = vmul.f32 %v1260, %v1264
  %vm1266 = vweird.f32 %v1247
  %vm1267 = vweird.f32 %v1260
  %vm1268 = vmor %vm1266, %vm1267
  %v1269 = vsel %vm1268, %v1260, %v1265
  %v1270 = vrsqrt.pop %v1248
  %v1271 = vmul.f32 %v1270, %v1248
  %v1272 = vmul.f32 %v1271, %v1270
  %v1273 = vmul.f32 0.5, %v1272
  %v1274 = vsub.f32 1.5, %v1273
  %v1275 = vmul.f32 %v1270, %v1274
  %vm1276 = vweird.f32 %v1248
  %vm1277 = vweird.f32 %v1270
  %vm1278 = vmor %vm1276, %vm1277
  %v1279 = vsel %vm1278, %v1270, %v1275
  %v1280 = vrsqrt.pop %v1249
  %v1281 = vmul.f32 %v1280, %v1249
  %v1282 = vmul.f32 %v1281, %v1280
  %v1283 = vmul.f32 0.5, %v1282
  %v1284 = vsub.f32 1.5, %v1283
  %v1285 = vmul.f32 %v1280, %v1284
  %vm1286 = vweird.f32 %v1249
  %vm1287 = vweird.f32 %v1280
  %vm1288 = vmor %vm1286, %vm1287
  %v1289 = vsel %vm1288, %v1280, %v1285
  %v1290 = vmul.f32 %v1222, %v1259
  %v1291 = vmul.f32 %v1223, %v1269
  %v1292 = vmul.f32 %v1224, %v1279
  %v1293 = vmul.f32 %v1225, %v1289
  %v1294 = vperm.slane %v1204, 0
  %v1295 = vmul.f32 %v1290, %v1294
  %v1296 = vmul.f32 %v1291, %v1294
  %v1297 = vmul.f32 %v1292, %v1294
  %v1298 = vmul.f32 %v1293, %v1294
  %v1299 = vperm.slane %v1205, 0
  %v1300 = vadd.f32 %v1295, %v1299
  %v1301 = vadd.f32 %v1296, %v1299
  %v1302 = vadd.f32 %v1297, %v1299
  %v1303 = vadd.f32 %v1298, %v1299
  %v1304 = vpack.c.bf16 %v1301, %v1300
  %v1305 = vpack.c.bf16 %v1303, %v1302
  %v1306 = vld [vmem:[%s4 + $0x50] sm:$0x1]
  %v1307 = vperm.slane %v1306, 0
  %v1312 = vunpack.c.l.b16 %v53
  %v1313 = vunpack.c.l.b16 %v54
  %v1314 = vunpack.c.l.b16 %v55
  %v1315 = vunpack.c.l.b16 %v56
  %v1316 = vpack.c.b16 %v1313, %v1312
  %v1317 = vpack.c.b16 %v1315, %v1314
  %v1321 = vsel %vm335, %v1304, 0
  %v1324 = vsel %vm335, %v1305, 0
  %1326 = vmatpush.bf16.msra.mxu0 0
  %1327 = vmatpush.bf16.msra.mxu0 0
  %1328 = vmatpush.bf16.msra.mxu0 0
  %1329 = vmatpush.bf16.msra.mxu0 0
  %1330 = vmatpush.bf16.msra.mxu0 0
  %1331 = vmatpush.bf16.msra.mxu0 0
  %1332 = vmatpush.bf16.msra.mxu0 %v1317
  %1333 = vmatpush.bf16.msra.mxu0 %v1316
  %1334 = vmatmul.bf16.gmra.mxu0 %v1321
  %v1335 = vpop.f32.mrf.mxu0
  %v1336 = vadd.f32 %v1307, %v1335
  %v1337 = vpop.f32.mrf.mxu0
  %v1338 = vadd.f32 %v1307, %v1337
  %1339 = vmatmul.bf16.gmra.mxu0 %v1324
  %v1340 = vpop.f32.mrf.mxu0
  %v1341 = vadd.f32 %v1307, %v1340
  %v1342 = vpop.f32.mrf.mxu0
  %v1343 = vadd.f32 %v1307, %v1342
  %1344 = vdwg.mxu0
  %v1345 = vmul.f32 %v1336, 0.5
  %v1346 = vmul.f32 %v1338, 0.5
  %v1347 = vmul.f32 %v1341, 0.5
  %v1348 = vmul.f32 %v1343, 0.5
  %v1349 = vmul.f32 %v1336, 0.70710677
  %v1350 = vmul.f32 %v1338, 0.70710677
  %v1351 = vmul.f32 %v1341, 0.70710677
  %v1352 = vmul.f32 %v1343, 0.70710677
  %v1353 = vmax.f32 %v1349, -4.0
  %v1354 = vmax.f32 %v1350, -4.0
  %v1355 = vmax.f32 %v1351, -4.0
  %v1356 = vmax.f32 %v1352, -4.0
  %v1357 = vmin.f32 %v1353, 4.0
  %v1358 = vmin.f32 %v1354, 4.0
  %v1359 = vmin.f32 %v1355, 4.0
  %v1360 = vmin.f32 %v1356, 4.0
  %v1361 = vmul.f32 %v1357, %v1357
  %v1362 = vmul.f32 %v1358, %v1358
  %v1363 = vmul.f32 %v1359, %v1359
  %v1364 = vmul.f32 %v1360, %v1360
  %v1365 = vmul.f32 %v1361, -2.7261424e-10
  %v1366 = vmul.f32 %v1362, -2.7261424e-10
  %v1367 = vmul.f32 %v1363, -2.7261424e-10
  %v1368 = vmul.f32 %v1364, -2.7261424e-10
  %v1369 = vadd.f32 %v1365, 2.7706815e-08
  %v1370 = vadd.f32 %v1366, 2.7706815e-08
  %v1371 = vadd.f32 %v1367, 2.7706815e-08
  %v1372 = vadd.f32 %v1368, 2.7706815e-08
  %v1373 = vmul.f32 %v1369, %v1361
  %v1374 = vmul.f32 %v1370, %v1362
  %v1375 = vmul.f32 %v1371, %v1363
  %v1376 = vmul.f32 %v1372, %v1364
  %v1377 = vadd.f32 %v1373, -2.101024e-06
  %v1378 = vadd.f32 %v1374, -2.101024e-06
  %v1379 = vadd.f32 %v1375, -2.101024e-06
  %v1380 = vadd.f32 %v1376, -2.101024e-06
  %v1381 = vmul.f32 %v1377, %v1361
  %v1382 = vmul.f32 %v1378, %v1362
  %v1383 = vmul.f32 %v1379, %v1363
  %v1384 = vmul.f32 %v1380, %v1364
  %v1385 = vadd.f32 %v1381, -5.6925062e-05
  %v1386 = vadd.f32 %v1382, -5.6925062e-05
  %v1387 = vadd.f32 %v1383, -5.6925062e-05
  %v1388 = vadd.f32 %v1384, -5.6925062e-05
  %v1389 = vmul.f32 %v1385, %v1361
  %v1390 = vmul.f32 %v1386, %v1362
  %v1391 = vmul.f32 %v1387, %v1363
  %v1392 = vmul.f32 %v1388, %v1364
  %v1393 = vadd.f32 %v1389, -0.00073499064
  %v1394 = vadd.f32 %v1390, -0.00073499064
  %v1395 = vadd.f32 %v1391, -0.00073499064
  %v1396 = vadd.f32 %v1392, -0.00073499064
  %v1397 = vmul.f32 %v1393, %v1361
  %v1398 = vmul.f32 %v1394, %v1362
  %v1399 = vmul.f32 %v1395, %v1363
  %v1400 = vmul.f32 %v1396, %v1364
  %v1401 = vadd.f32 %v1397, -0.0029546
  %v1402 = vadd.f32 %v1398, -0.0029546
  %v1403 = vadd.f32 %v1399, -0.0029546
  %v1404 = vadd.f32 %v1400, -0.0029546
  %v1405 = vmul.f32 %v1401, %v1361
  %v1406 = vmul.f32 %v1402, %v1362
  %v1407 = vmul.f32 %v1403, %v1363
  %v1408 = vmul.f32 %v1404, %v1364
  %v1409 = vadd.f32 %v1405, -0.016096033
  %v1410 = vadd.f32 %v1406, -0.016096033
  %v1411 = vadd.f32 %v1407, -0.016096033
  %v1412 = vadd.f32 %v1408, -0.016096033
  %v1413 = vmul.f32 %v1357, %v1409
  %v1414 = vmul.f32 %v1358, %v1410
  %v1415 = vmul.f32 %v1359, %v1411
  %v1416 = vmul.f32 %v1360, %v1412
  %v1417 = vmul.f32 %v1361, -1.45660715e-05
  %v1418 = vmul.f32 %v1362, -1.45660715e-05
  %v1419 = vmul.f32 %v1363, -1.45660715e-05
  %v1420 = vmul.f32 %v1364, -1.45660715e-05
  %v1421 = vadd.f32 %v1417, -0.00021337405
  %v1422 = vadd.f32 %v1418, -0.00021337405
  %v1423 = vadd.f32 %v1419, -0.00021337405
  %v1424 = vadd.f32 %v1420, -0.00021337405
  %v1425 = vmul.f32 %v1421, %v1361
  %v1426 = vmul.f32 %v1422, %v1362
  %v1427 = vmul.f32 %v1423, %v1363
  %v1428 = vmul.f32 %v1424, %v1364
  %v1429 = vadd.f32 %v1425, -0.001682827
  %v1430 = vadd.f32 %v1426, -0.001682827
  %v1431 = vadd.f32 %v1427, -0.001682827
  %v1432 = vadd.f32 %v1428, -0.001682827
  %v1433 = vmul.f32 %v1429, %v1361
  %v1434 = vmul.f32 %v1430, %v1362
  %v1435 = vmul.f32 %v1431, %v1363
  %v1436 = vmul.f32 %v1432, %v1364
  %v1437 = vadd.f32 %v1433, -0.0073733293
  %v1438 = vadd.f32 %v1434, -0.0073733293
  %v1439 = vadd.f32 %v1435, -0.0073733293
  %v1440 = vadd.f32 %v1436, -0.0073733293
  %v1441 = vmul.f32 %v1437, %v1361
  %v1442 = vmul.f32 %v1438, %v1362
  %v1443 = vmul.f32 %v1439, %v1363
  %v1444 = vmul.f32 %v1440, %v1364
  %v1445 = vadd.f32 %v1441, -0.014264739
  %v1446 = vadd.f32 %v1442, -0.014264739
  %v1447 = vadd.f32 %v1443, -0.014264739
  %v1448 = vadd.f32 %v1444, -0.014264739
  %v1449 = vrcp.pop %v1445
  %v1450 = vrcp.pop %v1446
  %v1451 = vrcp.pop %v1447
  %v1452 = vrcp.pop %v1448
  %v1453 = vmul.f32 %v1413, %v1449
  %v1454 = vmul.f32 %v1414, %v1450
  %v1455 = vmul.f32 %v1415, %v1451
  %v1456 = vmul.f32 %v1416, %v1452
  %v1457 = vadd.f32 %v1453, 1.0
  %v1458 = vadd.f32 %v1454, 1.0
  %v1459 = vadd.f32 %v1455, 1.0
  %v1460 = vadd.f32 %v1456, 1.0
  %v1461 = vmul.f32 %v1345, %v1457
  %v1462 = vmul.f32 %v1346, %v1458
  %v1463 = vmul.f32 %v1347, %v1459
  %v1464 = vmul.f32 %v1348, %v1460
  %v1465 = vpack.c.bf16 %v1462, %v1461
  %v1466 = vpack.c.bf16 %v1464, %v1463
  %v1483 = vunpack.c.l.b16 %v37
  %v1484 = vunpack.c.l.b16 %v38
  %v1485 = vunpack.c.l.b16 %v39
  %v1486 = vunpack.c.l.b16 %v40
  %v1487 = vunpack.c.l.b16 %v41
  %v1488 = vunpack.c.l.b16 %v42
  %v1489 = vunpack.c.l.b16 %v43
  %v1490 = vunpack.c.l.b16 %v44
  %v1491 = vunpack.c.l.b16 %v45
  %v1492 = vunpack.c.l.b16 %v46
  %v1493 = vunpack.c.l.b16 %v47
  %v1494 = vunpack.c.l.b16 %v48
  %v1495 = vunpack.c.l.b16 %v49
  %v1496 = vunpack.c.l.b16 %v50
  %v1497 = vunpack.c.l.b16 %v51
  %v1498 = vunpack.c.l.b16 %v52
  %v1499 = vpack.c.b16 %v1484, %v1483
  %v1500 = vpack.c.b16 %v1486, %v1485
  %v1501 = vpack.c.b16 %v1488, %v1487
  %v1502 = vpack.c.b16 %v1490, %v1489
  %v1503 = vpack.c.b16 %v1492, %v1491
  %v1504 = vpack.c.b16 %v1494, %v1493
  %v1505 = vpack.c.b16 %v1496, %v1495
  %v1506 = vpack.c.b16 %v1498, %v1497
  %1515 = vmatpush.bf16.msra.mxu0 %v1506
  %1516 = vmatpush.bf16.msra.mxu0 %v1505
  %1517 = vmatpush.bf16.msra.mxu0 %v1504
  %1518 = vmatpush.bf16.msra.mxu0 %v1503
  %1519 = vmatpush.bf16.msra.mxu0 %v1502
  %1520 = vmatpush.bf16.msra.mxu0 %v1501
  %1521 = vmatpush.bf16.msra.mxu0 %v1500
  %1522 = vmatpush.bf16.msra.mxu0 %v1499
  %1523 = vmatmul.bf16.gmra.mxu0 %v1465
  %v1524 = vpop.f32.mrf.mxu0
  %v1525 = vadd.f32 0.0, %v1524
  %v1526 = vpop.f32.mrf.mxu0
  %v1527 = vadd.f32 0.0, %v1526
  %1528 = vmatmul.bf16.gmra.mxu0 %v1466
  %v1529 = vpop.f32.mrf.mxu0
  %v1530 = vadd.f32 0.0, %v1529
  %v1531 = vpop.f32.mrf.mxu0
  %v1532 = vadd.f32 0.0, %v1531
  %1533 = vdwg.mxu0
  %v1534 = vadd.f32 %v1200, %v1525
  %v1535 = vadd.f32 %v1201, %v1527
  %v1536 = vadd.f32 %v1202, %v1530
  %v1537 = vadd.f32 %v1203, %v1532
  %v1538 = vld [vmem:[%s4 + $0x58] sm:$0x1]
  %v1539 = vperm.slane %v1538, 0
  %v1540 = vadd.f32 %v1534, %v1539
  %v1541 = vadd.f32 %v1535, %v1539
  %v1542 = vadd.f32 %v1536, %v1539
  %v1543 = vadd.f32 %v1537, %v1539
  %v1544 = vld [vmem:[%s4 + $0x60] sm:$0x1]
  %v1545 = vld [vmem:[%s4 + $0x68] sm:$0x1]
  %v1546 = vsel %vm335, %v1540, 0.0
  %1547 = vadd.xlane.f32.xlu0 %v1546
  %v1548 = vpop.xlane.xlu0 %1547
  %v1549 = vsel %vm335, %v1541, 0.0
  %1550 = vadd.xlane.f32.xlu0 %v1549
  %v1551 = vpop.xlane.xlu0 %1550
  %v1552 = vsel %vm335, %v1542, 0.0
  %1553 = vadd.xlane.f32.xlu0 %v1552
  %v1554 = vpop.xlane.xlu0 %1553
  %v1555 = vsel %vm335, %v1543, 0.0
  %1556 = vadd.xlane.f32.xlu0 %v1555
  %v1557 = vpop.xlane.xlu0 %1556
  %v1558 = vmul.f32 %v1548, %v354
  %v1559 = vmul.f32 %v1551, %v354
  %v1560 = vmul.f32 %v1554, %v354
  %v1561 = vmul.f32 %v1557, %v354
  %v1562 = vsub.f32 %v1540, %v1558
  %v1563 = vsub.f32 %v1541, %v1559
  %v1564 = vsub.f32 %v1542, %v1560
  %v1565 = vsub.f32 %v1543, %v1561
  %v1566 = vmul.f32 %v1562, %v1562
  %v1567 = vmul.f32 %v1563, %v1563
  %v1568 = vmul.f32 %v1564, %v1564
  %v1569 = vmul.f32 %v1565, %v1565
  %v1570 = vsel %vm335, %v1566, 0.0
  %1571 = vadd.xlane.f32.xlu0 %v1570
  %v1572 = vpop.xlane.xlu0 %1571
  %v1573 = vsel %vm335, %v1567, 0.0
  %1574 = vadd.xlane.f32.xlu0 %v1573
  %v1575 = vpop.xlane.xlu0 %1574
  %v1576 = vsel %vm335, %v1568, 0.0
  %1577 = vadd.xlane.f32.xlu0 %v1576
  %v1578 = vpop.xlane.xlu0 %1577
  %v1579 = vsel %vm335, %v1569, 0.0
  %1580 = vadd.xlane.f32.xlu0 %v1579
  %v1581 = vpop.xlane.xlu0 %1580
  %v1582 = vmul.f32 %v1572, %v354
  %v1583 = vmul.f32 %v1575, %v354
  %v1584 = vmul.f32 %v1578, %v354
  %v1585 = vmul.f32 %v1581, %v354
  %v1586 = vadd.f32 %v1582, 1e-05
  %v1587 = vadd.f32 %v1583, 1e-05
  %v1588 = vadd.f32 %v1584, 1e-05
  %v1589 = vadd.f32 %v1585, 1e-05
  %v1590 = vrsqrt.pop %v1586
  %v1591 = vmul.f32 %v1590, %v1586
  %v1592 = vmul.f32 %v1591, %v1590
  %v1593 = vmul.f32 0.5, %v1592
  %v1594 = vsub.f32 1.5, %v1593
  %v1595 = vmul.f32 %v1590, %v1594
  %vm1596 = vweird.f32 %v1586
  %vm1597 = vweird.f32 %v1590
  %vm1598 = vmor %vm1596, %vm1597
  %v1599 = vsel %vm1598, %v1590, %v1595
  %v1600 = vrsqrt.pop %v1587
  %v1601 = vmul.f32 %v1600, %v1587
  %v1602 = vmul.f32 %v1601, %v1600
  %v1603 = vmul.f32 0.5, %v1602
  %v1604 = vsub.f32 1.5, %v1603
  %v1605 = vmul.f32 %v1600, %v1604
  %vm1606 = vweird.f32 %v1587
  %vm1607 = vweird.f32 %v1600
  %vm1608 = vmor %vm1606, %vm1607
  %v1609 = vsel %vm1608, %v1600, %v1605
  %v1610 = vrsqrt.pop %v1588
  %v1611 = vmul.f32 %v1610, %v1588
  %v1612 = vmul.f32 %v1611, %v1610
  %v1613 = vmul.f32 0.5, %v1612
  %v1614 = vsub.f32 1.5, %v1613
  %v1615 = vmul.f32 %v1610, %v1614
  %vm1616 = vweird.f32 %v1588
  %vm1617 = vweird.f32 %v1610
  %vm1618 = vmor %vm1616, %vm1617
  %v1619 = vsel %vm1618, %v1610, %v1615
  %v1620 = vrsqrt.pop %v1589
  %v1621 = vmul.f32 %v1620, %v1589
  %v1622 = vmul.f32 %v1621, %v1620
  %v1623 = vmul.f32 0.5, %v1622
  %v1624 = vsub.f32 1.5, %v1623
  %v1625 = vmul.f32 %v1620, %v1624
  %vm1626 = vweird.f32 %v1589
  %vm1627 = vweird.f32 %v1620
  %vm1628 = vmor %vm1626, %vm1627
  %v1629 = vsel %vm1628, %v1620, %v1625
  %v1630 = vmul.f32 %v1562, %v1599
  %v1631 = vmul.f32 %v1563, %v1609
  %v1632 = vmul.f32 %v1564, %v1619
  %v1633 = vmul.f32 %v1565, %v1629
  %v1634 = vperm.slane %v1544, 0
  %v1635 = vmul.f32 %v1630, %v1634
  %v1636 = vmul.f32 %v1631, %v1634
  %v1637 = vmul.f32 %v1632, %v1634
  %v1638 = vmul.f32 %v1633, %v1634
  %v1639 = vperm.slane %v1545, 0
  %v1640 = vadd.f32 %v1635, %v1639
  %v1641 = vadd.f32 %v1636, %v1639
  %v1642 = vadd.f32 %v1637, %v1639
  %v1643 = vadd.f32 %v1638, %v1639
  %v1644 = vpack.c.bf16 %v1641, %v1640
  %v1645 = vpack.c.bf16 %v1643, %v1642
  %v1646 = vld [vmem:[%s4 + $0x70] sm:$0x1]
  %v1647 = vperm.slane %v1646, 0
  %v1652 = vunpack.c.l.b16 %v61
  %v1653 = vunpack.c.l.b16 %v62
  %v1654 = vunpack.c.l.b16 %v63
  %v1655 = vunpack.c.l.b16 %v64
  %v1656 = vpack.c.b16 %v1653, %v1652
  %v1657 = vpack.c.b16 %v1655, %v1654
  %v1661 = vsel %vm335, %v1644, 0
  %v1664 = vsel %vm335, %v1645, 0
  %1666 = vmatpush.bf16.msra.mxu0 0
  %1667 = vmatpush.bf16.msra.mxu0 0
  %1668 = vmatpush.bf16.msra.mxu0 0
  %1669 = vmatpush.bf16.msra.mxu0 0
  %1670 = vmatpush.bf16.msra.mxu0 0
  %1671 = vmatpush.bf16.msra.mxu0 0
  %1672 = vmatpush.bf16.msra.mxu0 %v1657
  %1673 = vmatpush.bf16.msra.mxu0 %v1656
  %1674 = vmatmul.bf16.gmra.mxu0 %v1661
  %v1675 = vpop.f32.mrf.mxu0
  %v1676 = vadd.f32 %v1647, %v1675
  %v1677 = vpop.f32.mrf.mxu0
  %v1678 = vadd.f32 %v1647, %v1677
  %1679 = vmatmul.bf16.gmra.mxu0 %v1664
  %v1680 = vpop.f32.mrf.mxu0
  %v1681 = vadd.f32 %v1647, %v1680
  %v1682 = vpop.f32.mrf.mxu0
  %v1683 = vadd.f32 %v1647, %v1682
  %1684 = vdwg.mxu0
  %1685 = vst [vmem:[%s5] sm:$0xff] %v1676
  %1686 = vst [vmem:[%s5 + $0x8] sm:$0xff] %v1678
  %1687 = vst [vmem:[%s5 + $0x10] sm:$0xff] %v1681
  %1688 = vst [vmem:[%s5 + $0x18] sm:$0xff] %v1683
  // Predicated region
  $region22: #{cross_attention_decoder.1} parent=0 // pred_check
    _
  $region23: #{cross_attention_decoder.1} parent=0 // pred_check_branch
    %1690 = sbr.rel (0) target = $region25
  $region24: #{cross_attention_decoder.1} parent=0 // pred_region
    _
  $region25: #{cross_attention_decoder.1} parent=0 // pred_fallthru
    _
  // Predicated region
  $region26: #{cross_attention_decoder.1} parent=0 // pred_check
    _
  $region27: #{cross_attention_decoder.1} parent=0 // pred_check_branch
    %1692 = sbr.rel (0) target = $region29
  $region28: #{cross_attention_decoder.1} parent=0 // pred_region
    _
  $region29: #{cross_attention_decoder.1} parent=0 // pred_fallthru
    _

</llo_original>
